<compile_context>
chip_gen: v7x
topology: tpu7x:2x2x1
jax: 0.10.0
libtpu: 0.0.40
codegen_flags: <defaults>
</compile_context>

<pallas_src>
import math
import jax
import jax.numpy as jnp
from jax.experimental import pallas as pl
from jax.experimental.pallas import tpu as pltpu

_INV_SQRT2 = 1.0 / math.sqrt(2.0)
_LN_EPS = 1e-5


def _image_projection_kernel(x_ref, w1_ref, b1_ref, w2_ref, b2_ref,
                             gamma_ref, beta_ref, o_ref, acc_ref, proj_ref):
    k = pl.program_id(1)
    nk = pl.num_programs(1)
    tk = w1_ref.shape[1]          # K-tile width along the shared-embedding axis

    @pl.when(k == 0)
    def _():
        acc_ref[...] = jnp.zeros_like(acc_ref)

    # --- first Linear, columns [k*tk, (k+1)*tk) of `projected` -------------
    # Feed the native input dtype straight into the MXU; accumulate in f32.
    x = x_ref[...]
    proj_k = jnp.dot(x, w1_ref[...], preferred_element_type=jnp.float32)
    proj_k = proj_k + b1_ref[...]

    # Stash this column block of the pre-GELU activation for the residual.
    start = pl.multiple_of(k * tk, tk)
    proj_ref[:, pl.ds(start, tk)] = proj_k

    # Exact-erf GELU (matches nn.GELU() default).
    h_k = 0.5 * proj_k * (1.0 + jax.lax.erf(proj_k * _INV_SQRT2))

    # --- second Linear: accumulate h_k @ W2[kblk, :] into the f32 scratch ---
    acc_ref[...] += jnp.dot(h_k.astype(w2_ref.dtype), w2_ref[...],
                            preferred_element_type=jnp.float32)

    # --- epilogue once per batch tile: bias, dropout(=id), residual, LN -----
    @pl.when(k == nk - 1)
    def _():
        # Dropout is identity in the deterministic/eval forward pass.
        # TODO(synk): training-mode dropout (pltpu.prng_random_bits mask) not emitted.
        y = acc_ref[...] + b2_ref[...] + proj_ref[...]
        mean = jnp.mean(y, axis=-1, keepdims=True)
        centered = y - mean
        var = jnp.mean(centered * centered, axis=-1, keepdims=True)
        y_norm = centered * jax.lax.rsqrt(var + _LN_EPS)      # EUP rsqrt
        o_ref[...] = (y_norm * gamma_ref[...] + beta_ref[...]).astype(o_ref.dtype)


def _largest_aligned_divisor(n, unit, cap):
    """Largest multiple of `unit` dividing `n` and <= cap; None if there is none."""
    best = None
    t = unit
    cap = min(cap, n)
    while t <= cap:
        if n % t == 0:
            best = t
        t += unit
    return best


def _pick_tile_b(B, max_tile=256):
    # Big batch tiles amortize the ~0.35 us/step pipeline overhead and fill the
    # MXU rows, but keep >=2 grid steps when the batch allows so the "parallel"
    # axis can shard across both TensorCores of a v7x chip.
    if B % 8 != 0:
        return B                          # full-array block is always legal
    cap = min(max_tile, B // 2) if B >= 16 else B
    tile = _largest_aligned_divisor(B, 8, max(cap, 8))
    return tile if tile is not None else B


def _pick_tk(D_sh, max_tile=512):
    # Stream W1 in (D_in, tk) and W2 in (tk, D_sh) blocks so weight VMEM does
    # not scale with D_sh**2.
    if D_sh % 128 != 0:
        return D_sh
    tile = _largest_aligned_divisor(D_sh, 128, max_tile)
    return tile if tile is not None else D_sh


def image_projection(x, w1, b1, w2, b2, gamma, beta, *, tile_b=None, tk=None):
    """x: (B, D_in) -> (B, D_sh). Weights stored (in, out), i.e. x @ W + b."""
    B, D_in = x.shape
    D_sh = w1.shape[1]

    if tile_b is None:
        tile_b = _pick_tile_b(B)
    if tk is None:
        tk = _pick_tk(D_sh)
    assert B % tile_b == 0, (B, tile_b)
    assert D_sh % tk == 0, (D_sh, tk)

    # 1-row params as (1, D_sh) so they live happily in VMEM and broadcast.
    b1_2d = b1.reshape(1, D_sh)
    b2_2d = b2.reshape(1, D_sh)
    gamma_2d = gamma.reshape(1, D_sh)
    beta_2d = beta.reshape(1, D_sh)

    grid = (B // tile_b, D_sh // tk)      # (batch tiles, K tiles); reduction last

    itemsize = jnp.dtype(x.dtype).itemsize
    cost = pl.CostEstimate(
        flops=2 * B * D_in * D_sh + 2 * B * D_sh * D_sh,
        transcendentals=B * D_sh,         # erf (+ rsqrt, negligible)
        bytes_accessed=itemsize * (x.size + w1.size + w2.size + 4 * D_sh
                                   + B * D_sh),
    )

    return pl.pallas_call(
        _image_projection_kernel,
        out_shape=jax.ShapeDtypeStruct((B, D_sh), x.dtype),
        grid_spec=pltpu.PrefetchScalarGridSpec(
            num_scalar_prefetch=0,
            grid=grid,
            in_specs=[
                pl.BlockSpec((tile_b, D_in), lambda i, k: (i, 0)),  # x tile (not re-DMA'd over k)
                pl.BlockSpec((D_in, tk), lambda i, k: (0, k)),      # W1 column block
                pl.BlockSpec((1, tk), lambda i, k: (0, k)),         # b1 column block
                pl.BlockSpec((tk, D_sh), lambda i, k: (k, 0)),      # W2 row block (streamed)
                pl.BlockSpec((1, D_sh), lambda i, k: (0, 0)),       # b2
                pl.BlockSpec((1, D_sh), lambda i, k: (0, 0)),       # gamma
                pl.BlockSpec((1, D_sh), lambda i, k: (0, 0)),       # beta
            ],
            out_specs=pl.BlockSpec((tile_b, D_sh), lambda i, k: (i, 0)),
            scratch_shapes=[
                pltpu.VMEM((tile_b, D_sh), jnp.float32),  # f32 accumulator for h @ W2
                pltpu.VMEM((tile_b, D_sh), jnp.float32),  # pre-GELU activation (residual)
            ],
        ),
        compiler_params=pltpu.CompilerParams(
            dimension_semantics=("parallel", "arbitrary")),
        cost_estimate=cost,
    )(x, w1, b1_2d, w2, b2_2d, gamma_2d, beta_2d)


def image_projection_ref(x, w1, b1, w2, b2, gamma, beta):
    projected = x @ w1 + b1
    h = jax.nn.gelu(projected, approximate=False)
    y = h @ w2 + b2
    y = y + projected
    mean = jnp.mean(y, axis=-1, keepdims=True)
    var = jnp.mean((y - mean) ** 2, axis=-1, keepdims=True)
    y = (y - mean) * jax.lax.rsqrt(var + _LN_EPS)
    return y * gamma + beta


if __name__ == "__main__":
    # A batch of image embeddings, kept small but big enough to exercise a
    # 2 (batch tiles) x 2 (K tiles) grid.
    B = 256                # batch
    D_IN = 128             # image_embedding_size
    D_SH = 512             # shared_embedding_size

    key = jax.random.PRNGKey(0)
    kx, kw1, kb1, kw2, kb2, kg, kb = jax.random.split(key, 7)

    x = jax.random.normal(kx, (B, D_IN), dtype=jnp.float32)

    # Deterministic synthetic parameters (nn.Linear-style scaling).
    w1 = jax.random.normal(kw1, (D_IN, D_SH), dtype=jnp.float32) / math.sqrt(D_IN)
    b1 = jax.random.normal(kb1, (D_SH,), dtype=jnp.float32) * 0.01
    w2 = jax.random.normal(kw2, (D_SH, D_SH), dtype=jnp.float32) / math.sqrt(D_SH)
    b2 = jax.random.normal(kb2, (D_SH,), dtype=jnp.float32) * 0.01
    gamma = 1.0 + 0.1 * jax.random.normal(kg, (D_SH,), dtype=jnp.float32)
    beta = 0.1 * jax.random.normal(kb, (D_SH,), dtype=jnp.float32)

    # tk=256 exercises the K-tiled accumulator path (2 K-steps) in this demo;
    # left to auto-pick in real use.
    out = image_projection(x, w1, b1, w2, b2, gamma, beta, tk=256)
    out = jax.block_until_ready(out)

    ref = image_projection_ref(x, w1, b1, w2, b2, gamma, beta)
    assert out.shape == (B, D_SH)
    assert jnp.allclose(out, ref, atol=1e-4, rtol=1e-4), "mismatch vs reference"

    print("KERNEL_OK")
</pallas_src>

<mosaic_0001>
module attributes {stable_mosaic.version = 11 : i64} {
  func.func @_image_projection_kernel(%arg0: i32, %arg1: i32, %arg2: memref<128x128xf32, #tpu.memory_space<vmem>>, %arg3: memref<128x256xf32, #tpu.memory_space<vmem>>, %arg4: memref<1x256xf32, #tpu.memory_space<vmem>>, %arg5: memref<256x512xf32, #tpu.memory_space<vmem>>, %arg6: memref<1x512xf32, #tpu.memory_space<vmem>>, %arg7: memref<1x512xf32, #tpu.memory_space<vmem>>, %arg8: memref<1x512xf32, #tpu.memory_space<vmem>>, %arg9: memref<128x512xf32, #tpu.memory_space<vmem>>, %arg10: memref<128x512xf32, #tpu.memory_space<vmem>>, %arg11: memref<128x512xf32, #tpu.memory_space<vmem>>) attributes {dimension_semantics = [#tpu.dimension_semantics<parallel>, #tpu.dimension_semantics<arbitrary>], iteration_bounds = array<i64: 2, 2>, scalar_prefetch = 0 : i64, scratch_operands = 2 : i64, tpu.core_type = #tpu.core_type<tc>, window_params = [{transform_indices = @transform_0, window_bounds = array<i64: 128, 128>}, {transform_indices = @transform_1, window_bounds = array<i64: 128, 256>}, {transform_indices = @transform_2, window_bounds = array<i64: 1, 256>}, {transform_indices = @transform_3, window_bounds = array<i64: 256, 512>}, {pipeline_mode = #tpu.pipeline_mode<synchronous>, transform_indices = @transform_4, window_bounds = array<i64: 1, 512>}, {pipeline_mode = #tpu.pipeline_mode<synchronous>, transform_indices = @transform_5, window_bounds = array<i64: 1, 512>}, {pipeline_mode = #tpu.pipeline_mode<synchronous>, transform_indices = @transform_6, window_bounds = array<i64: 1, 512>}, {transform_indices = @transform_7, window_bounds = array<i64: 128, 512>}]} {
    %c0_i32 = arith.constant 0 : i32
    %0 = arith.cmpi eq, %arg1, %c0_i32 : i32
    %1 = arith.extui %0 : i1 to i32
    %c0_i32_0 = arith.constant 0 : i32
    %2 = arith.cmpi ne, %1, %c0_i32_0 : i32
    scf.if %2 {
      %cst_18 = arith.constant 0.000000e+00 : f32
      %29 = vector.broadcast %cst_18 : f32 to vector<128x512xf32>
      %c0_19 = arith.constant 0 : index
      %c0_20 = arith.constant 0 : index
      %30 = vector.load %arg10[%c0_19, %c0_20] : memref<128x512xf32, #tpu.memory_space<vmem>>, vector<128x512xf32>
      tpu.vector_store %arg10[%c0_19, %c0_20], %29 {strides = array<i32>} : memref<128x512xf32, #tpu.memory_space<vmem>>, vector<128x512xf32>,
    } else {
    }
    %c0 = arith.constant 0 : index
    %c0_1 = arith.constant 0 : index
    %3 = vector.load %arg2[%c0, %c0_1] : memref<128x128xf32, #tpu.memory_space<vmem>>, vector<128x128xf32>
    %c0_2 = arith.constant 0 : index
    %c0_3 = arith.constant 0 : index
    %4 = vector.load %arg3[%c0_2, %c0_3] : memref<128x256xf32, #tpu.memory_space<vmem>>, vector<128x256xf32>
    %cst = arith.constant dense<0.000000e+00> : vector<128x256xf32>
    %5 = tpu.matmul %3, %4, %cst {dimension_numbers = #tpu.dot_dimension_numbers<[1], [0], [0], [1], [0, 0, 1, 1], [], []>} : vector<128x128xf32>, vector<128x256xf32>, vector<128x256xf32> -> vector<128x256xf32>
    %c0_4 = arith.constant 0 : index
    %c0_5 = arith.constant 0 : index
    %6 = vector.load %arg4[%c0_4, %c0_5] : memref<1x256xf32, #tpu.memory_space<vmem>>, vector<1x256xf32>
    %7 = vector.broadcast %6 : vector<1x256xf32> to vector<128x256xf32>
    %8 = arith.addf %5, %7 : vector<128x256xf32>
    %c256_i32 = arith.constant 256 : i32
    %9 = arith.muli %arg1, %c256_i32 : i32
    %10 = tpu.assume_multiple %9, 256 : i32
    %c0_6 = arith.constant 0 : index
    %11 = arith.index_cast %10 : i32 to index
    %12 = vector.load %arg11[%c0_6, %11] : memref<128x512xf32, #tpu.memory_space<vmem>>, vector<128x256xf32>
    tpu.vector_store %arg11[%c0_6, %11], %8 {strides = array<i32>} : memref<128x512xf32, #tpu.memory_space<vmem>>, vector<128x256xf32>,
    %cst_7 = arith.constant 5.000000e-01 : f32
    %13 = vector.broadcast %cst_7 : f32 to vector<128x256xf32>
    %14 = arith.mulf %13, %8 : vector<128x256xf32>
    %cst_8 = arith.constant 0.707106769 : f32
    %15 = vector.broadcast %cst_8 : f32 to vector<128x256xf32>
    %16 = arith.mulf %8, %15 : vector<128x256xf32>
    %17 = math.erf %16 : vector<128x256xf32>
    %cst_9 = arith.constant 1.000000e+00 : f32
    %18 = vector.broadcast %cst_9 : f32 to vector<128x256xf32>
    %19 = arith.addf %18, %17 : vector<128x256xf32>
    %20 = arith.mulf %14, %19 : vector<128x256xf32>
    %c0_10 = arith.constant 0 : index
    %c0_11 = arith.constant 0 : index
    %21 = vector.load %arg10[%c0_10, %c0_11] : memref<128x512xf32, #tpu.memory_space<vmem>>, vector<128x512xf32>
    %c0_12 = arith.constant 0 : index
    %c0_13 = arith.constant 0 : index
    %22 = vector.load %arg5[%c0_12, %c0_13] : memref<256x512xf32, #tpu.memory_space<vmem>>, vector<256x512xf32>
    %cst_14 = arith.constant dense<0.000000e+00> : vector<128x512xf32>
    %23 = tpu.matmul %20, %22, %cst_14 {dimension_numbers = #tpu.dot_dimension_numbers<[1], [0], [0], [1], [0, 0, 1, 1], [], []>} : vector<128x256xf32>, vector<256x512xf32>, vector<128x512xf32> -> vector<128x512xf32>
    %24 = arith.addf %21, %23 : vector<128x512xf32>
    %c0_15 = arith.constant 0 : index
    %c0_16 = arith.constant 0 : index
    %25 = vector.load %arg10[%c0_15, %c0_16] : memref<128x512xf32, #tpu.memory_space<vmem>>, vector<128x512xf32>
    tpu.vector_store %arg10[%c0_15, %c0_16], %24 {strides = array<i32>} : memref<128x512xf32, #tpu.memory_space<vmem>>, vector<128x512xf32>,
    %c1_i32 = arith.constant 1 : i32
    %26 = arith.cmpi eq, %arg1, %c1_i32 : i32
    %27 = arith.extui %26 : i1 to i32
    %c0_i32_17 = arith.constant 0 : i32
    %28 = arith.cmpi ne, %27, %c0_i32_17 : i32
    scf.if %28 {
      %c0_18 = arith.constant 0 : index
      %c0_19 = arith.constant 0 : index
      %29 = vector.load %arg10[%c0_18, %c0_19] : memref<128x512xf32, #tpu.memory_space<vmem>>, vector<128x512xf32>
      %c0_20 = arith.constant 0 : index
      %c0_21 = arith.constant 0 : index
      %30 = vector.load %arg6[%c0_20, %c0_21] : memref<1x512xf32, #tpu.memory_space<vmem>>, vector<1x512xf32>
      %31 = vector.broadcast %30 : vector<1x512xf32> to vector<128x512xf32>
      %32 = arith.addf %29, %31 : vector<128x512xf32>
      %c0_22 = arith.constant 0 : index
      %c0_23 = arith.constant 0 : index
      %33 = vector.load %arg11[%c0_22, %c0_23] : memref<128x512xf32, #tpu.memory_space<vmem>>, vector<128x512xf32>
      %34 = arith.addf %32, %33 : vector<128x512xf32>
      %cst_24 = arith.constant dense<0.000000e+00> : vector<128xf32>
      %35 = vector.multi_reduction <add>, %34, %cst_24 [1] : vector<128x512xf32> to vector<128xf32>
      %36 = vector.shape_cast %35 : vector<128xf32> to vector<128x1xf32>
      %cst_25 = arith.constant 5.120000e+02 : f32
      %37 = vector.broadcast %cst_25 : f32 to vector<128x1xf32>
      %38 = arith.divf %36, %37 : vector<128x1xf32>
      %39 = vector.broadcast %38 : vector<128x1xf32> to vector<128x512xf32>
      %40 = arith.subf %34, %39 : vector<128x512xf32>
      %41 = arith.mulf %40, %40 : vector<128x512xf32>
      %cst_26 = arith.constant dense<0.000000e+00> : vector<128xf32>
      %42 = vector.multi_reduction <add>, %41, %cst_26 [1] : vector<128x512xf32> to vector<128xf32>
      %43 = vector.shape_cast %42 : vector<128xf32> to vector<128x1xf32>
      %cst_27 = arith.constant 5.120000e+02 : f32
      %44 = vector.broadcast %cst_27 : f32 to vector<128x1xf32>
      %45 = arith.divf %43, %44 : vector<128x1xf32>
      %cst_28 = arith.constant 9.99999974E-6 : f32
      %46 = vector.broadcast %cst_28 : f32 to vector<128x1xf32>
      %47 = arith.addf %45, %46 : vector<128x1xf32>
      %48 = math.rsqrt %47 : vector<128x1xf32>
      %49 = vector.broadcast %48 : vector<128x1xf32> to vector<128x512xf32>
      %50 = arith.mulf %40, %49 : vector<128x512xf32>
      %c0_29 = arith.constant 0 : index
      %c0_30 = arith.constant 0 : index
      %51 = vector.load %arg7[%c0_29, %c0_30] : memref<1x512xf32, #tpu.memory_space<vmem>>, vector<1x512xf32>
      %52 = vector.broadcast %51 : vector<1x512xf32> to vector<128x512xf32>
      %53 = arith.mulf %50, %52 : vector<128x512xf32>
      %c0_31 = arith.constant 0 : index
      %c0_32 = arith.constant 0 : index
      %54 = vector.load %arg8[%c0_31, %c0_32] : memref<1x512xf32, #tpu.memory_space<vmem>>, vector<1x512xf32>
      %55 = vector.broadcast %54 : vector<1x512xf32> to vector<128x512xf32>
      %56 = arith.addf %53, %55 : vector<128x512xf32>
      %c0_33 = arith.constant 0 : index
      %c0_34 = arith.constant 0 : index
      %57 = vector.load %arg9[%c0_33, %c0_34] : memref<128x512xf32, #tpu.memory_space<vmem>>, vector<128x512xf32>
      tpu.vector_store %arg9[%c0_33, %c0_34], %56 {strides = array<i32>} : memref<128x512xf32, #tpu.memory_space<vmem>>, vector<128x512xf32>,
    } else {
    }
    return
  }
  func.func @transform_0(%arg0: i32, %arg1: i32) -> (i32, i32) {
    %c0_i32 = arith.constant 0 : i32
    %c0_i32_0 = arith.constant 0 : i32
    return %arg0, %c0_i32 : i32, i32
  }
  func.func @transform_1(%arg0: i32, %arg1: i32) -> (i32, i32) {
    %c0_i32 = arith.constant 0 : i32
    %c0_i32_0 = arith.constant 0 : i32
    return %c0_i32, %arg1 : i32, i32
  }
  func.func @transform_2(%arg0: i32, %arg1: i32) -> (i32, i32) {
    %c0_i32 = arith.constant 0 : i32
    %c0_i32_0 = arith.constant 0 : i32
    return %c0_i32, %arg1 : i32, i32
  }
  func.func @transform_3(%arg0: i32, %arg1: i32) -> (i32, i32) {
    %c0_i32 = arith.constant 0 : i32
    %c0_i32_0 = arith.constant 0 : i32
    return %arg1, %c0_i32 : i32, i32
  }
  func.func @transform_4(%arg0: i32, %arg1: i32) -> (i32, i32) {
    %c0_i32 = arith.constant 0 : i32
    %c0_i32_0 = arith.constant 0 : i32
    %c0_i32_1 = arith.constant 0 : i32
    return %c0_i32, %c0_i32_0 : i32, i32
  }
  func.func @transform_5(%arg0: i32, %arg1: i32) -> (i32, i32) {
    %c0_i32 = arith.constant 0 : i32
    %c0_i32_0 = arith.constant 0 : i32
    %c0_i32_1 = arith.constant 0 : i32
    return %c0_i32, %c0_i32_0 : i32, i32
  }
  func.func @transform_6(%arg0: i32, %arg1: i32) -> (i32, i32) {
    %c0_i32 = arith.constant 0 : i32
    %c0_i32_0 = arith.constant 0 : i32
    %c0_i32_1 = arith.constant 0 : i32
    return %c0_i32, %c0_i32_0 : i32, i32
  }
  func.func @transform_7(%arg0: i32, %arg1: i32) -> (i32, i32) {
    %c0_i32 = arith.constant 0 : i32
    %c0_i32_0 = arith.constant 0 : i32
    return %arg0, %c0_i32 : i32, i32
  }
}

</mosaic_0001>

<llo_original>
// kernel: tpu_custom_call.1
$region0: #{tpu_custom_call.1}
  #allocation0 [shape = 'u32[]', space=smem, size = 0x4, offset = 0x4, fixed_abs, tag = 'smem constant byte address 0x4 - core index']
  #allocation1 [shape = 'u32[144,128]{1,0:T(1,128)}', space=vmem, size = 0x12000, scoped, tag = 'internal scratch']
  #allocation2 [shape = 'f32[128,512]{1,0:T(8,128)}', space=vmem, size = 0x40000, scoped, tag = 'scratch operand']
  #allocation3 [shape = 'f32[128,512]{1,0:T(8,128)}', space=vmem, size = 0x40000, scoped, tag = 'scratch operand']
  %s0 = inlined_call_operand.hbm [shape: f32[256,128], index: 0, kind: input, shape index: {}]
  %s1 = inlined_call_operand.hbm [shape: f32[128,512], index: 1, kind: input, shape index: {}]
  %s2 = inlined_call_operand.vmem [shape: f32[1,512], index: 2, kind: input, shape index: {}]
  %s3 = inlined_call_operand.hbm [shape: f32[512,512], index: 3, kind: input, shape index: {}]
  %s4 = inlined_call_operand.vmem [shape: f32[1,512], index: 4, kind: input, shape index: {}]
  %s5 = inlined_call_operand.vmem [shape: f32[1,512], index: 5, kind: input, shape index: {}]
  %s6 = inlined_call_operand.vmem [shape: f32[1,512], index: 6, kind: input, shape index: {}]
  %s7 = inlined_call_operand.hbm [shape: f32[256,512], index: 7, kind: output, shape index: {}]
  %s8 = sld [smem:[#allocation0]]
  $region81: #{tpu_custom_call.1} parent=0
    _
  %s10 = ssub.s32 1, %s8
  %s11 = scalar_select 0, %s10, %s8
  $region1: #{tpu_custom_call.1} parent=0
    #allocation4 [shape = 'u8[131072]{0}', space=vmem, size = 0x20000, scoped, tag = 'input window, operand 0']
    #allocation5 [shape = 's32[2]{0}', space=sflag, size = 0x8, scoped, tag = 'scoped memory for tpu_custom_call.1']
    #allocation6 [shape = 's32[2]{0}', space=sflag, size = 0x8, scoped, tag = 'scoped memory for tpu_custom_call.1']
    #allocation7 [shape = 'u8[262144]{0}', space=vmem, size = 0x40000, scoped, tag = 'input window, operand 1']
    #allocation8 [shape = 's32[2]{0}', space=sflag, size = 0x8, scoped, tag = 'scoped memory for tpu_custom_call.1']
    #allocation9 [shape = 'u8[1048576]{0}', space=vmem, size = 0x100000, scoped, tag = 'input window, operand 3']
    #allocation10 [shape = 'u8[524288]{0}', space=vmem, size = 0x80000, scoped, tag = 'output window, operand 0']
    %12 = vsyncpa [#allocation5], 0
    %s13 = scalar_lea.sflag [#allocation5], 1
    %14 = vsyncpa %s13, 0
    %15 = vsyncpa [#allocation8], 0
    %s16 = scalar_lea.sflag [#allocation8], 1
    %17 = vsyncpa %s16, 0
    %18 = vsyncpa [#allocation6], 0
    %s19 = scalar_lea.sflag [#allocation6], 1
    %20 = vsyncpa %s19, 0
    loop: start=0, step=1, limit=6
    $region2: #{tpu_custom_call.1} parent=1 // loop_pre_header
      _
    $region3: #{tpu_custom_call.1} parent=1 // loop_header
      %s22 = sphi 0, %s26
      %p23 = scmp.ge.s32.totalorder %s22, 6
      %s29 = sphi 0, %s41
      %s30 = sphi 0, %s37
      %s31 = sphi 0, %s29
      %s32 = sphi 0, %s30
      %s33 = sphi 0, %s31
      %s34 = sphi 0, %s32
      %s44 = sphi 0, %s46
      %s47 = sphi 0, %s44
      %s48 = sphi 0, %s47
      %s64 = sphi 0, %s48
      %s70 = sphi 0, %s72
      %s73 = sphi 0, %s70
      %s74 = sphi 0, %s73
      %s90 = sphi 0, %s74
      %s96 = sphi 0, %s98
      %s99 = sphi 0, %s96
      %s100 = sphi 0, %s99
      %s116 = sphi 0, %s100
      %s122 = sphi 0, %s124
      %s125 = sphi 0, %s122
      %s126 = sphi 0, %s125
      %s142 = sphi 0, %s126
      %s146 = sphi 0, %s146
      %s148 = sphi 0, %s146
      %s149 = sphi 0, %s148
      %s163 = sphi 0, %s149
      %s167 = sphi 0, %s167
      %s169 = sphi 0, %s167
      %s170 = sphi 0, %s169
      %s184 = sphi 0, %s170
      %s188 = sphi 0, %s188
      %s190 = sphi 0, %s188
      %s191 = sphi 0, %s190
      %s205 = sphi 0, %s191
      %s211 = sphi 0, %s213
      %s214 = sphi 0, %s211
      %s215 = sphi 0, %s214
      %s231 = sphi 0, %s215
    $region4: #{tpu_custom_call.1} parent=1 // loop_header_branch
      %25 = sbr.rel (%p23) target = $region8
    $region5: #{tpu_custom_call.1} parent=1 // loop_body
      %s27 = ssub.s32 %s22, 1
      %s28 = ssub.s32 %s22, 2
      %s35 = sadd.s32 1, %s30
      %p36 = scmp.ge.s32.totalorder %s35, 2
      %s37 = scalar_select %p36, 0, %s35
      %s38 = sadd.s32 1, %s29
      %s39 = scalar_select %p36, %s38, %s29
      %p40 = scmp.ge.s32.totalorder %s39, 2
      %s41 = scalar_select %p40, 0, %s39
      %s42 = ssub.s32 %s29, %s41
      %p43 = scmp.eq.s32.totalorder %s42, 0
      %s45 = sadd.s32 %s44, 1
      %s46 = scalar_select %p43, %s44, %s45
      %p49 = pneg %p43
      %p50 = scmp.eq.s32.totalorder %s22, 3
      %p51 = por %p49, %p50
      %p52 = scmp.ne.s32.totalorder %s44, %s47
      %p53 = scmp.eq.s32.totalorder %s22, 0
      %p54 = por %p52, %p53
      %p55 = scmp.ne.s32.totalorder %s44, %s47
      %p56 = scmp.eq.s32.totalorder %s27, 3
      %p57 = por %p55, %p56
      %p58 = scmp.ne.s32.totalorder %s47, %s48
      %p59 = scmp.eq.s32.totalorder %s27, 0
      %p60 = por %p58, %p59
      %p61 = scmp.ne.s32.totalorder %s47, %s48
      %p62 = scmp.eq.s32.totalorder %s28, 3
      %p63 = por %p61, %p62
      %p65 = scmp.ne.s32.totalorder %s48, %s64
      %p66 = scmp.eq.s32.totalorder %s28, 0
      %p67 = por %p65, %p66
      %s68 = ssub.s32 %s30, %s37
      %p69 = scmp.eq.s32.totalorder %s68, 0
      %s71 = sadd.s32 %s70, 1
      %s72 = scalar_select %p69, %s70, %s71
      %p75 = pneg %p69
      %p76 = scmp.eq.s32.totalorder %s22, 3
      %p77 = por %p75, %p76
      %p78 = scmp.ne.s32.totalorder %s70, %s73
      %p79 = scmp.eq.s32.totalorder %s22, 0
      %p80 = por %p78, %p79
      %p81 = scmp.ne.s32.totalorder %s70, %s73
      %p82 = scmp.eq.s32.totalorder %s27, 3
      %p83 = por %p81, %p82
      %p84 = scmp.ne.s32.totalorder %s73, %s74
      %p85 = scmp.eq.s32.totalorder %s27, 0
      %p86 = por %p84, %p85
      %p87 = scmp.ne.s32.totalorder %s73, %s74
      %p88 = scmp.eq.s32.totalorder %s28, 3
      %p89 = por %p87, %p88
      %p91 = scmp.ne.s32.totalorder %s74, %s90
      %p92 = scmp.eq.s32.totalorder %s28, 0
      %p93 = por %p91, %p92
      %s94 = ssub.s32 %s30, %s37
      %p95 = scmp.eq.s32.totalorder %s94, 0
      %s97 = sadd.s32 %s96, 1
      %s98 = scalar_select %p95, %s96, %s97
      %p101 = pneg %p95
      %p102 = scmp.eq.s32.totalorder %s22, 3
      %p103 = por %p101, %p102
      %p104 = scmp.ne.s32.totalorder %s96, %s99
      %p105 = scmp.eq.s32.totalorder %s22, 0
      %p106 = por %p104, %p105
      %p107 = scmp.ne.s32.totalorder %s96, %s99
      %p108 = scmp.eq.s32.totalorder %s27, 3
      %p109 = por %p107, %p108
      %p110 = scmp.ne.s32.totalorder %s99, %s100
      %p111 = scmp.eq.s32.totalorder %s27, 0
      %p112 = por %p110, %p111
      %p113 = scmp.ne.s32.totalorder %s99, %s100
      %p114 = scmp.eq.s32.totalorder %s28, 3
      %p115 = por %p113, %p114
      %p117 = scmp.ne.s32.totalorder %s100, %s116
      %p118 = scmp.eq.s32.totalorder %s28, 0
      %p119 = por %p117, %p118
      %s120 = ssub.s32 %s30, %s37
      %p121 = scmp.eq.s32.totalorder %s120, 0
      %s123 = sadd.s32 %s122, 1
      %s124 = scalar_select %p121, %s122, %s123
      %p127 = pneg %p121
      %p128 = scmp.eq.s32.totalorder %s22, 3
      %p129 = por %p127, %p128
      %p130 = scmp.ne.s32.totalorder %s122, %s125
      %p131 = scmp.eq.s32.totalorder %s22, 0
      %p132 = por %p130, %p131
      %p133 = scmp.ne.s32.totalorder %s122, %s125
      %p134 = scmp.eq.s32.totalorder %s27, 3
      %p135 = por %p133, %p134
      %p136 = scmp.ne.s32.totalorder %s125, %s126
      %p137 = scmp.eq.s32.totalorder %s27, 0
      %p138 = por %p136, %p137
      %p139 = scmp.ne.s32.totalorder %s125, %s126
      %p140 = scmp.eq.s32.totalorder %s28, 3
      %p141 = por %p139, %p140
      %p143 = scmp.ne.s32.totalorder %s126, %s142
      %p144 = scmp.eq.s32.totalorder %s28, 0
      %p145 = por %p143, %p144
      %s147 = sadd.s32 %s146, 1
      %p150 = scmp.eq.s32.totalorder %s22, 3
      %p151 = scmp.ne.s32.totalorder %s146, %s148
      %p152 = scmp.eq.s32.totalorder %s22, 0
      %p153 = por %p151, %p152
      %p154 = scmp.ne.s32.totalorder %s146, %s148
      %p155 = scmp.eq.s32.totalorder %s27, 3
      %p156 = por %p154, %p155
      %p157 = scmp.ne.s32.totalorder %s148, %s149
      %p158 = scmp.eq.s32.totalorder %s27, 0
      %p159 = por %p157, %p158
      %p160 = scmp.ne.s32.totalorder %s148, %s149
      %p161 = scmp.eq.s32.totalorder %s28, 3
      %p162 = por %p160, %p161
      %p164 = scmp.ne.s32.totalorder %s149, %s163
      %p165 = scmp.eq.s32.totalorder %s28, 0
      %p166 = por %p164, %p165
      %s168 = sadd.s32 %s167, 1
      %p171 = scmp.eq.s32.totalorder %s22, 3
      %p172 = scmp.ne.s32.totalorder %s167, %s169
      %p173 = scmp.eq.s32.totalorder %s22, 0
      %p174 = por %p172, %p173
      %p175 = scmp.ne.s32.totalorder %s167, %s169
      %p176 = scmp.eq.s32.totalorder %s27, 3
      %p177 = por %p175, %p176
      %p178 = scmp.ne.s32.totalorder %s169, %s170
      %p179 = scmp.eq.s32.totalorder %s27, 0
      %p180 = por %p178, %p179
      %p181 = scmp.ne.s32.totalorder %s169, %s170
      %p182 = scmp.eq.s32.totalorder %s28, 3
      %p183 = por %p181, %p182
      %p185 = scmp.ne.s32.totalorder %s170, %s184
      %p186 = scmp.eq.s32.totalorder %s28, 0
      %p187 = por %p185, %p186
      %s189 = sadd.s32 %s188, 1
      %p192 = scmp.eq.s32.totalorder %s22, 3
      %p193 = scmp.ne.s32.totalorder %s188, %s190
      %p194 = scmp.eq.s32.totalorder %s22, 0
      %p195 = por %p193, %p194
      %p196 = scmp.ne.s32.totalorder %s188, %s190
      %p197 = scmp.eq.s32.totalorder %s27, 3
      %p198 = por %p196, %p197
      %p199 = scmp.ne.s32.totalorder %s190, %s191
      %p200 = scmp.eq.s32.totalorder %s27, 0
      %p201 = por %p199, %p200
      %p202 = scmp.ne.s32.totalorder %s190, %s191
      %p203 = scmp.eq.s32.totalorder %s28, 3
      %p204 = por %p202, %p203
      %p206 = scmp.ne.s32.totalorder %s191, %s205
      %p207 = scmp.eq.s32.totalorder %s28, 0
      %p208 = por %p206, %p207
      %s209 = ssub.s32 %s29, %s41
      %p210 = scmp.eq.s32.totalorder %s209, 0
      %s212 = sadd.s32 %s211, 1
      %s213 = scalar_select %p210, %s211, %s212
      %p216 = pneg %p210
      %p217 = scmp.eq.s32.totalorder %s22, 3
      %p218 = por %p216, %p217
      %p219 = scmp.ne.s32.totalorder %s211, %s214
      %p220 = scmp.eq.s32.totalorder %s22, 0
      %p221 = por %p219, %p220
      %p222 = scmp.ne.s32.totalorder %s211, %s214
      %p223 = scmp.eq.s32.totalorder %s27, 3
      %p224 = por %p222, %p223
      %p225 = scmp.ne.s32.totalorder %s214, %s215
      %p226 = scmp.eq.s32.totalorder %s27, 0
      %p227 = por %p225, %p226
      %p228 = scmp.ne.s32.totalorder %s214, %s215
      %p229 = scmp.eq.s32.totalorder %s28, 3
      %p230 = por %p228, %p229
      %p232 = scmp.ne.s32.totalorder %s215, %s231
      %p233 = scmp.eq.s32.totalorder %s28, 0
      %p234 = por %p232, %p233
      %p235 = scmp.le.s32.totalorder 1, %s22
      %p236 = scmp.lt.s32.totalorder %s22, 5
      %p237 = pnand %p235, %p236
      %p238 = pneg %p237
      // Predicated region
      $region9: #{tpu_custom_call.1} parent=5 // pred_check
        _
      $region10: #{tpu_custom_call.1} parent=5 // pred_check_branch
        %240 = sbr.rel (%p237) target = $region12
      $region11: #{tpu_custom_call.1} parent=5 // pred_region
        %s241 = ssub.s32 %s22, 1
        // Predicated region
        $region13: #{tpu_custom_call.1} parent=11 // pred_check
          %p242 = pneg %p159
        $region14: #{tpu_custom_call.1} parent=11 // pred_check_branch
          %244 = sbr.rel (%p242) target = $region16
        $region15: #{tpu_custom_call.1} parent=11 // pred_region
          _
        $region16: #{tpu_custom_call.1} parent=11 // pred_fallthru
          _
        // Predicated region
        $region17: #{tpu_custom_call.1} parent=11 // pred_check
          %p245 = pneg %p180
        $region18: #{tpu_custom_call.1} parent=11 // pred_check_branch
          %247 = sbr.rel (%p245) target = $region20
        $region19: #{tpu_custom_call.1} parent=11 // pred_region
          _
        $region20: #{tpu_custom_call.1} parent=11 // pred_fallthru
          _
        // Predicated region
        $region21: #{tpu_custom_call.1} parent=11 // pred_check
          %p248 = pneg %p201
        $region22: #{tpu_custom_call.1} parent=11 // pred_check_branch
          %250 = sbr.rel (%p248) target = $region24
        $region23: #{tpu_custom_call.1} parent=11 // pred_region
          _
        $region24: #{tpu_custom_call.1} parent=11 // pred_fallthru
          _
      $region12: #{tpu_custom_call.1} parent=5 // pred_fallthru
        _
      %p251 = scmp.lt.s32.totalorder %s22, 4
      // Predicated region
      $region25: #{tpu_custom_call.1} parent=5 // pred_check
        %p252 = pneg %p251
      $region26: #{tpu_custom_call.1} parent=5 // pred_check_branch
        %254 = sbr.rel (%p252) target = $region28
      $region27: #{tpu_custom_call.1} parent=5 // pred_region
        // Predicated region
        $region29: #{tpu_custom_call.1} parent=27 // pred_check
          %p255 = pneg %p54
        $region30: #{tpu_custom_call.1} parent=27 // pred_check_branch
          %257 = sbr.rel (%p255) target = $region32
        $region31: #{tpu_custom_call.1} parent=27 // pred_region
          %s258 = sand.u32 %s44, 1
          %s259 = scalar_lea.sflag [#allocation5], %s258
          %s260 = sand.u32 %s44, 1
          %s261 = smul.addr %s260, 128
          %s262 = scalar_lea.vmem [#allocation4], %s261
          %s263 = smul.u32 16, %s29
          %s265 = ssub.s32 2048, 2048
          %266 = vsyncadd %s259, %s265
          %s267 = smul.addr %s263, 128
          %s268 = scalar_lea.hbm %s0, %s267
          %s269 = sshll.u32 %s262, 4
          %s270 = int_to_ptr.vmem [resolvable:$true] %s269
          %275 = dma.hbm_to_vmem [thread:$0]  %s268, 2048, %s270, %s259, 128, 128, 8
        $region32: #{tpu_custom_call.1} parent=27 // pred_fallthru
          _
        // Predicated region
        $region33: #{tpu_custom_call.1} parent=27 // pred_check
          %p276 = pneg %p80
        $region34: #{tpu_custom_call.1} parent=27 // pred_check_branch
          %278 = sbr.rel (%p276) target = $region36
        $region35: #{tpu_custom_call.1} parent=27 // pred_region
          %s279 = sand.u32 %s22, 1
          %s280 = scalar_lea.sflag [#allocation8], %s279
          %s281 = sand.u32 %s70, 1
          %s282 = smul.addr %s281, 256
          %s283 = scalar_lea.vmem [#allocation7], %s282
          %s284 = smul.u32 2, %s30
          %s286 = ssub.s32 4096, 4096
          %287 = vsyncadd %s280, %s286
          %s288 = smul.addr %s284, 128
          %s289 = scalar_lea.hbm %s1, %s288
          %s290 = sshll.u32 %s283, 4
          %s291 = int_to_ptr.vmem [resolvable:$true] %s290
          %296 = dma.hbm_to_vmem [thread:$0]  %s289, 4096, %s291, %s280, 512, 256, 16
        $region36: #{tpu_custom_call.1} parent=27 // pred_fallthru
          _
        // Predicated region
        $region37: #{tpu_custom_call.1} parent=27 // pred_check
          %p297 = pneg %p106
        $region38: #{tpu_custom_call.1} parent=27 // pred_check_branch
          %299 = sbr.rel (%p297) target = $region40
        $region39: #{tpu_custom_call.1} parent=27 // pred_region
          %s300 = smul.u32 2, %s30
          %p301 = scmp.lt.s32.totalorder %s300, 3
          %s302 = scalar_select %p301, %s300, 3
          %s303 = scalar_lea.vmem %s2, %s302
          %s304 = smul.u32 2, %s30
        $region40: #{tpu_custom_call.1} parent=27 // pred_fallthru
          _
        // Predicated region
        $region41: #{tpu_custom_call.1} parent=27 // pred_check
          %p305 = pneg %p132
        $region42: #{tpu_custom_call.1} parent=27 // pred_check_branch
          %307 = sbr.rel (%p305) target = $region44
        $region43: #{tpu_custom_call.1} parent=27 // pred_region
          %s308 = sand.u32 %s22, 1
          %s309 = scalar_lea.sflag [#allocation8], %s308
          %s310 = sand.u32 %s122, 1
          %s311 = smul.addr %s310, 1024
          %s312 = scalar_lea.vmem [#allocation9], %s311
          %s313 = smul.u32 32, %s30
          %s315 = ssub.s32 16384, 16384
          %316 = vsyncadd %s309, %s315
          %s317 = smul.addr %s313, 4
          %s318 = smul.addr %s317, 128
          %s319 = scalar_lea.hbm %s3, %s318
          %s320 = sshll.u32 %s312, 4
          %s321 = int_to_ptr.vmem [resolvable:$true] %s320
          %326 = dma.hbm_to_vmem [thread:$0]  %s319, 16384, %s321, %s309, 512, 512, 32
        $region44: #{tpu_custom_call.1} parent=27 // pred_fallthru
          _
      $region28: #{tpu_custom_call.1} parent=5 // pred_fallthru
        _
      %p327 = scmp.le.s32.totalorder 1, %s22
      %p328 = scmp.lt.s32.totalorder %s22, 5
      %p329 = pnand %p327, %p328
      %p330 = pneg %p329
      // Predicated region
      $region45: #{tpu_custom_call.1} parent=5 // pred_check
        _
      $region46: #{tpu_custom_call.1} parent=5 // pred_check_branch
        %332 = sbr.rel (%p329) target = $region48
      $region47: #{tpu_custom_call.1} parent=5 // pred_region
        %s333 = ssub.s32 %s22, 1
        %s334 = sand.u32 %s47, 1
        %s335 = scalar_lea.sflag [#allocation5], %s334
        %s336 = sand.u32 %s47, 1
        %s337 = smul.addr %s336, 128
        %s338 = scalar_lea.vmem [#allocation4], %s337
        // Predicated region
        $region49: #{tpu_custom_call.1} parent=47 // pred_check
          %p339 = pneg %p60
        $region50: #{tpu_custom_call.1} parent=47 // pred_check_branch
          %341 = sbr.rel (%p339) target = $region52
        $region51: #{tpu_custom_call.1} parent=47 // pred_region
          %342 = dma.done %s335, 2048
        $region52: #{tpu_custom_call.1} parent=47 // pred_fallthru
          _
        %s343 = sand.u32 %s27, 1
        %s344 = scalar_lea.sflag [#allocation8], %s343
        %s345 = sand.u32 %s73, 1
        %s346 = smul.addr %s345, 256
        %s347 = scalar_lea.vmem [#allocation7], %s346
        // Predicated region
        $region53: #{tpu_custom_call.1} parent=47 // pred_check
          %p348 = pneg %p86
        $region54: #{tpu_custom_call.1} parent=47 // pred_check_branch
          %350 = sbr.rel (%p348) target = $region56
        $region55: #{tpu_custom_call.1} parent=47 // pred_region
          %351 = dma.done %s344, 4096
        $region56: #{tpu_custom_call.1} parent=47 // pred_fallthru
          _
        %s352 = sand.u32 %s27, 1
        %s353 = scalar_lea.sflag [#allocation8], %s352
        %s354 = sand.u32 %s125, 1
        %s355 = smul.addr %s354, 1024
        %s356 = scalar_lea.vmem [#allocation9], %s355
        // Predicated region
        $region57: #{tpu_custom_call.1} parent=47 // pred_check
          %p357 = pneg %p138
        $region58: #{tpu_custom_call.1} parent=47 // pred_check_branch
          %359 = sbr.rel (%p357) target = $region60
        $region59: #{tpu_custom_call.1} parent=47 // pred_region
          %360 = dma.done %s353, 16384
        $region60: #{tpu_custom_call.1} parent=47 // pred_fallthru
          _
        %s361 = sand.u32 %s47, 1
        %s362 = scalar_lea.sflag [#allocation5], %s361
        %s363 = sand.u32 %s47, 1
        %s364 = smul.addr %s363, 128
        %s365 = scalar_lea.vmem [#allocation4], %s364
        %p366 = pneg %p60
        %p367 = pneg %p57
        %s368 = sand.u32 %s27, 1
        %s369 = scalar_lea.sflag [#allocation8], %s368
        %s370 = sand.u32 %s73, 1
        %s371 = smul.addr %s370, 256
        %s372 = scalar_lea.vmem [#allocation7], %s371
        %p373 = pneg %p86
        %p374 = pneg %p83
        %s375 = smul.u32 2, %s32
        %p376 = scmp.lt.s32.totalorder %s375, 3
        %s377 = scalar_select %p376, %s375, 3
        %s378 = scalar_lea.vmem %s2, %s377
        %p379 = pneg %p112
        %p380 = pneg %p109
        %s381 = sand.u32 %s27, 1
        %s382 = scalar_lea.sflag [#allocation8], %s381
        %s383 = sand.u32 %s125, 1
        %s384 = smul.addr %s383, 1024
        %s385 = scalar_lea.vmem [#allocation9], %s384
        %p386 = pneg %p138
        %p387 = pneg %p135
        %p388 = pneg %p159
        %p389 = pneg %p156
        %p390 = pneg %p180
        %p391 = pneg %p177
        %p392 = pneg %p201
        %p393 = pneg %p198
        %p394 = pneg %p227
        %p395 = pneg %p224
        %s396 = sand.u32 %s214, 1
        %s397 = scalar_lea.sflag [#allocation6], %s396
        %s398 = sand.u32 %s214, 1
        %s399 = smul.addr %s398, 512
        %s400 = scalar_lea.vmem [#allocation10], %s399
        %s401 = smul.u32 16, %s31
        %s402 = smul.u32 2, %s32
        %s403 = smul.u32 2, %s32
        %p404 = scmp.lt.s32.totalorder %s403, 3
        %s405 = scalar_select %p404, %s403, 3
        %s406 = scalar_lea.vmem %s2, %s405
        %s407 = smul.u32 2, %s32
        %s408 = smul.u32 32, %s32
        %s409 = smul.u32 16, %s31
        %p410 = scmp.eq.s32.totalorder %s32, 0
        // Predicated region
        $region61: #{tpu_custom_call.1} parent=47 // pred_check
          %p411 = pneg %p410
        $region62: #{tpu_custom_call.1} parent=47 // pred_check_branch
          %413 = sbr.rel (%p411) target = $region64
        $region63: #{tpu_custom_call.1} parent=47 // pred_region
          %414 = vst [vmem:[#allocation2] sm:$0xff] 0.0
          %415 = vst [vmem:[#allocation2 + $0x8] sm:$0xff] 0.0
          %416 = vst [vmem:[#allocation2 + $0x10] sm:$0xff] 0.0
          %417 = vst [vmem:[#allocation2 + $0x18] sm:$0xff] 0.0
          %418 = vst [vmem:[#allocation2 + $0x20] sm:$0xff] 0.0
          %419 = vst [vmem:[#allocation2 + $0x28] sm:$0xff] 0.0
          %420 = vst [vmem:[#allocation2 + $0x30] sm:$0xff] 0.0
          %421 = vst [vmem:[#allocation2 + $0x38] sm:$0xff] 0.0
          %422 = vst [vmem:[#allocation2 + $0x40] sm:$0xff] 0.0
          %423 = vst [vmem:[#allocation2 + $0x48] sm:$0xff] 0.0
          %424 = vst [vmem:[#allocation2 + $0x50] sm:$0xff] 0.0
          %425 = vst [vmem:[#allocation2 + $0x58] sm:$0xff] 0.0
          %426 = vst [vmem:[#allocation2 + $0x60] sm:$0xff] 0.0
          %427 = vst [vmem:[#allocation2 + $0x68] sm:$0xff] 0.0
          %428 = vst [vmem:[#allocation2 + $0x70] sm:$0xff] 0.0
          %429 = vst [vmem:[#allocation2 + $0x78] sm:$0xff] 0.0
          %430 = vst [vmem:[#allocation2 + $0x80] sm:$0xff] 0.0
          %431 = vst [vmem:[#allocation2 + $0x88] sm:$0xff] 0.0
          %432 = vst [vmem:[#allocation2 + $0x90] sm:$0xff] 0.0
          %433 = vst [vmem:[#allocation2 + $0x98] sm:$0xff] 0.0
          %434 = vst [vmem:[#allocation2 + $0xa0] sm:$0xff] 0.0
          %435 = vst [vmem:[#allocation2 + $0xa8] sm:$0xff] 0.0
          %436 = vst [vmem:[#allocation2 + $0xb0] sm:$0xff] 0.0
          %437 = vst [vmem:[#allocation2 + $0xb8] sm:$0xff] 0.0
          %438 = vst [vmem:[#allocation2 + $0xc0] sm:$0xff] 0.0
          %439 = vst [vmem:[#allocation2 + $0xc8] sm:$0xff] 0.0
          %440 = vst [vmem:[#allocation2 + $0xd0] sm:$0xff] 0.0
          %441 = vst [vmem:[#allocation2 + $0xd8] sm:$0xff] 0.0
          %442 = vst [vmem:[#allocation2 + $0xe0] sm:$0xff] 0.0
          %443 = vst [vmem:[#allocation2 + $0xe8] sm:$0xff] 0.0
          %444 = vst [vmem:[#allocation2 + $0xf0] sm:$0xff] 0.0
          %445 = vst [vmem:[#allocation2 + $0xf8] sm:$0xff] 0.0
          %446 = vst [vmem:[#allocation2 + $0x100] sm:$0xff] 0.0
          %447 = vst [vmem:[#allocation2 + $0x108] sm:$0xff] 0.0
          %448 = vst [vmem:[#allocation2 + $0x110] sm:$0xff] 0.0
          %449 = vst [vmem:[#allocation2 + $0x118] sm:$0xff] 0.0
          %450 = vst [vmem:[#allocation2 + $0x120] sm:$0xff] 0.0
          %451 = vst [vmem:[#allocation2 + $0x128] sm:$0xff] 0.0
          %452 = vst [vmem:[#allocation2 + $0x130] sm:$0xff] 0.0
          %453 = vst [vmem:[#allocation2 + $0x138] sm:$0xff] 0.0
          %454 = vst [vmem:[#allocation2 + $0x140] sm:$0xff] 0.0
          %455 = vst [vmem:[#allocation2 + $0x148] sm:$0xff] 0.0
          %456 = vst [vmem:[#allocation2 + $0x150] sm:$0xff] 0.0
          %457 = vst [vmem:[#allocation2 + $0x158] sm:$0xff] 0.0
          %458 = vst [vmem:[#allocation2 + $0x160] sm:$0xff] 0.0
          %459 = vst [vmem:[#allocation2 + $0x168] sm:$0xff] 0.0
          %460 = vst [vmem:[#allocation2 + $0x170] sm:$0xff] 0.0
          %461 = vst [vmem:[#allocation2 + $0x178] sm:$0xff] 0.0
          %462 = vst [vmem:[#allocation2 + $0x180] sm:$0xff] 0.0
          %463 = vst [vmem:[#allocation2 + $0x188] sm:$0xff] 0.0
          %464 = vst [vmem:[#allocation2 + $0x190] sm:$0xff] 0.0
          %465 = vst [vmem:[#allocation2 + $0x198] sm:$0xff] 0.0
          %466 = vst [vmem:[#allocation2 + $0x1a0] sm:$0xff] 0.0
          %467 = vst [vmem:[#allocation2 + $0x1a8] sm:$0xff] 0.0
          %468 = vst [vmem:[#allocation2 + $0x1b0] sm:$0xff] 0.0
          %469 = vst [vmem:[#allocation2 + $0x1b8] sm:$0xff] 0.0
          %470 = vst [vmem:[#allocation2 + $0x1c0] sm:$0xff] 0.0
          %471 = vst [vmem:[#allocation2 + $0x1c8] sm:$0xff] 0.0
          %472 = vst [vmem:[#allocation2 + $0x1d0] sm:$0xff] 0.0
          %473 = vst [vmem:[#allocation2 + $0x1d8] sm:$0xff] 0.0
          %474 = vst [vmem:[#allocation2 + $0x1e0] sm:$0xff] 0.0
          %475 = vst [vmem:[#allocation2 + $0x1e8] sm:$0xff] 0.0
          %476 = vst [vmem:[#allocation2 + $0x1f0] sm:$0xff] 0.0
          %477 = vst [vmem:[#allocation2 + $0x1f8] sm:$0xff] 0.0
        $region64: #{tpu_custom_call.1} parent=47 // pred_fallthru
          _
        %v478 = vld [vmem:[%s338] sm:$0xff]
        %v479 = vld [vmem:[%s338 + $0x8] sm:$0xff]
        %v480 = vld [vmem:[%s338 + $0x10] sm:$0xff]
        %v481 = vld [vmem:[%s338 + $0x18] sm:$0xff]
        %v482 = vld [vmem:[%s338 + $0x20] sm:$0xff]
        %v483 = vld [vmem:[%s338 + $0x28] sm:$0xff]
        %v484 = vld [vmem:[%s338 + $0x30] sm:$0xff]
        %v485 = vld [vmem:[%s338 + $0x38] sm:$0xff]
        %v486 = vld [vmem:[%s338 + $0x40] sm:$0xff]
        %v487 = vld [vmem:[%s338 + $0x48] sm:$0xff]
        %v488 = vld [vmem:[%s338 + $0x50] sm:$0xff]
        %v489 = vld [vmem:[%s338 + $0x58] sm:$0xff]
        %v490 = vld [vmem:[%s338 + $0x60] sm:$0xff]
        %v491 = vld [vmem:[%s338 + $0x68] sm:$0xff]
        %v492 = vld [vmem:[%s338 + $0x70] sm:$0xff]
        %v493 = vld [vmem:[%s338 + $0x78] sm:$0xff]
        %v494 = vld [vmem:[%s347] sm:$0xff]
        %v495 = vld [vmem:[%s347 + $0x8] sm:$0xff]
        %v496 = vld [vmem:[%s347 + $0x10] sm:$0xff]
        %v497 = vld [vmem:[%s347 + $0x18] sm:$0xff]
        %v498 = vld [vmem:[%s347 + $0x20] sm:$0xff]
        %v499 = vld [vmem:[%s347 + $0x28] sm:$0xff]
        %v500 = vld [vmem:[%s347 + $0x30] sm:$0xff]
        %v501 = vld [vmem:[%s347 + $0x38] sm:$0xff]
        %v502 = vld [vmem:[%s347 + $0x40] sm:$0xff]
        %v503 = vld [vmem:[%s347 + $0x48] sm:$0xff]
        %v504 = vld [vmem:[%s347 + $0x50] sm:$0xff]
        %v505 = vld [vmem:[%s347 + $0x58] sm:$0xff]
        %v506 = vld [vmem:[%s347 + $0x60] sm:$0xff]
        %v507 = vld [vmem:[%s347 + $0x68] sm:$0xff]
        %v508 = vld [vmem:[%s347 + $0x70] sm:$0xff]
        %v509 = vld [vmem:[%s347 + $0x78] sm:$0xff]
        %v510 = vld [vmem:[%s347 + $0x80] sm:$0xff]
        %v511 = vld [vmem:[%s347 + $0x88] sm:$0xff]
        %v512 = vld [vmem:[%s347 + $0x90] sm:$0xff]
        %v513 = vld [vmem:[%s347 + $0x98] sm:$0xff]
        %v514 = vld [vmem:[%s347 + $0xa0] sm:$0xff]
        %v515 = vld [vmem:[%s347 + $0xa8] sm:$0xff]
        %v516 = vld [vmem:[%s347 + $0xb0] sm:$0xff]
        %v517 = vld [vmem:[%s347 + $0xb8] sm:$0xff]
        %v518 = vld [vmem:[%s347 + $0xc0] sm:$0xff]
        %v519 = vld [vmem:[%s347 + $0xc8] sm:$0xff]
        %v520 = vld [vmem:[%s347 + $0xd0] sm:$0xff]
        %v521 = vld [vmem:[%s347 + $0xd8] sm:$0xff]
        %v522 = vld [vmem:[%s347 + $0xe0] sm:$0xff]
        %v523 = vld [vmem:[%s347 + $0xe8] sm:$0xff]
        %v524 = vld [vmem:[%s347 + $0xf0] sm:$0xff]
        %v525 = vld [vmem:[%s347 + $0xf8] sm:$0xff]
        %v526 = vld [vmem:[%s406] sm:$0x3]
        %v528 = vlaneseq
        %v529 = vshrl.u32 %v528, 7
        %v530 = vsub.s32 0, %v529
        %v531 = vrot.slane %v526, %v530
        %v532 = vlaneseq
        %v533 = vshrl.u32 %v532, 7
        %v534 = vsub.s32 1, %v533
        %v535 = vrot.slane %v526, %v534
        %538 = vmatprep.subr.mxu0 %v495
        %539 = vmatpush1.msra.mxu0 %v494
        %540 = vmatprep.subr.mxu0 %v497
        %541 = vmatpush1.msra.mxu0 %v496
        %542 = vmatprep.subr.mxu0 %v499
        %543 = vmatpush1.msra.mxu0 %v498
        %544 = vmatprep.subr.mxu0 %v501
        %545 = vmatpush1.msra.mxu0 %v500
        %546 = vmatprep.subr.mxu0 %v503
        %547 = vmatpush1.msra.mxu0 %v502
        %548 = vmatprep.subr.mxu0 %v505
        %549 = vmatpush1.msra.mxu0 %v504
        %550 = vmatprep.subr.mxu0 %v507
        %551 = vmatpush1.msra.mxu0 %v506
        %552 = vmatprep.subr.mxu0 %v509
        %553 = vmatpush1.msra.mxu0 %v508
        %554 = vmatprep.subr.mxu0 %v511
        %555 = vmatpush1.msra.mxu0 %v510
        %556 = vmatprep.subr.mxu0 %v513
        %557 = vmatpush1.msra.mxu0 %v512
        %558 = vmatprep.subr.mxu0 %v515
        %559 = vmatpush1.msra.mxu0 %v514
        %560 = vmatprep.subr.mxu0 %v517
        %561 = vmatpush1.msra.mxu0 %v516
        %562 = vmatprep.subr.mxu0 %v519
        %563 = vmatpush1.msra.mxu0 %v518
        %564 = vmatprep.subr.mxu0 %v521
        %565 = vmatpush1.msra.mxu0 %v520
        %566 = vmatprep.subr.mxu0 %v523
        %567 = vmatpush1.msra.mxu0 %v522
        %568 = vmatprep.subr.mxu0 %v525
        %569 = vmatpush1.msra.mxu0 %v524
        %570 = vmatprep.subr.mxu0 0.0
        %571 = vmatpush1.msra.mxu0 0.0
        %572 = vmatprep.subr.mxu0 0.0
        %573 = vmatpush1.msra.mxu0 0.0
        %574 = vmatprep.subr.mxu0 0.0
        %575 = vmatpush1.msra.mxu0 0.0
        %576 = vmatprep.subr.mxu0 0.0
        %577 = vmatpush1.msra.mxu0 0.0
        %578 = vmatprep.subr.mxu0 0.0
        %579 = vmatpush1.msra.mxu0 0.0
        %580 = vmatprep.subr.mxu0 0.0
        %581 = vmatpush1.msra.mxu0 0.0
        %582 = vmatprep.subr.mxu0 0.0
        %583 = vmatpush1.msra.mxu0 0.0
        %584 = vmatprep.subr.mxu0 0.0
        %585 = vmatpush1.msra.mxu0 0.0
        %586 = vmatprep.subr.mxu0 0.0
        %587 = vmatpush1.msra.mxu0 0.0
        %588 = vmatprep.subr.mxu0 0.0
        %589 = vmatpush1.msra.mxu0 0.0
        %590 = vmatprep.subr.mxu0 0.0
        %591 = vmatpush1.msra.mxu0 0.0
        %592 = vmatprep.subr.mxu0 0.0
        %593 = vmatpush1.msra.mxu0 0.0
        %594 = vmatprep.subr.mxu0 0.0
        %595 = vmatpush1.msra.mxu0 0.0
        %596 = vmatprep.subr.mxu0 0.0
        %597 = vmatpush1.msra.mxu0 0.0
        %598 = vmatprep.subr.mxu0 0.0
        %599 = vmatpush1.msra.mxu0 0.0
        %600 = vmatprep.subr.mxu0 0.0
        %601 = vmatpush1.msra.mxu0 0.0
        %602 = vmatprep.mubr.f32.mxu0 0.0
        %603 = vmatmul.mubr.f32.gmra.mrb[0].mxu0 %v478
        %v604 = vpop.f32.mrb[0].mxu0
        %v605 = vadd.f32 %v531, %v604
        %v606 = vpop.f32.mrb[0].mxu0
        %v607 = vadd.f32 %v535, %v606
        %608 = vmatprep.mubr.f32.mxu0 0.0
        %609 = vmatmul.mubr.f32.gmra.mrb[0].mxu0 %v479
        %v610 = vpop.f32.mrb[0].mxu0
        %v611 = vadd.f32 %v531, %v610
        %v612 = vpop.f32.mrb[0].mxu0
        %v613 = vadd.f32 %v535, %v612
        %614 = vmatprep.mubr.f32.mxu0 0.0
        %615 = vmatmul.mubr.f32.gmra.mrb[0].mxu0 %v480
        %v616 = vpop.f32.mrb[0].mxu0
        %v617 = vadd.f32 %v531, %v616
        %v618 = vpop.f32.mrb[0].mxu0
        %v619 = vadd.f32 %v535, %v618
        %620 = vmatprep.mubr.f32.mxu0 0.0
        %621 = vmatmul.mubr.f32.gmra.mrb[0].mxu0 %v481
        %v622 = vpop.f32.mrb[0].mxu0
        %v623 = vadd.f32 %v531, %v622
        %v624 = vpop.f32.mrb[0].mxu0
        %v625 = vadd.f32 %v535, %v624
        %626 = vmatprep.mubr.f32.mxu0 0.0
        %627 = vmatmul.mubr.f32.gmra.mrb[0].mxu0 %v482
        %v628 = vpop.f32.mrb[0].mxu0
        %v629 = vadd.f32 %v531, %v628
        %v630 = vpop.f32.mrb[0].mxu0
        %v631 = vadd.f32 %v535, %v630
        %632 = vmatprep.mubr.f32.mxu0 0.0
        %633 = vmatmul.mubr.f32.gmra.mrb[0].mxu0 %v483
        %v634 = vpop.f32.mrb[0].mxu0
        %v635 = vadd.f32 %v531, %v634
        %v636 = vpop.f32.mrb[0].mxu0
        %v637 = vadd.f32 %v535, %v636
        %638 = vmatprep.mubr.f32.mxu0 0.0
        %639 = vmatmul.mubr.f32.gmra.mrb[0].mxu0 %v484
        %v640 = vpop.f32.mrb[0].mxu0
        %v641 = vadd.f32 %v531, %v640
        %v642 = vpop.f32.mrb[0].mxu0
        %v643 = vadd.f32 %v535, %v642
        %644 = vmatprep.mubr.f32.mxu0 0.0
        %645 = vmatmul.mubr.f32.gmra.mrb[0].mxu0 %v485
        %v646 = vpop.f32.mrb[0].mxu0
        %v647 = vadd.f32 %v531, %v646
        %v648 = vpop.f32.mrb[0].mxu0
        %v649 = vadd.f32 %v535, %v648
        %650 = vmatprep.mubr.f32.mxu0 0.0
        %651 = vmatmul.mubr.f32.gmra.mrb[0].mxu0 %v486
        %v652 = vpop.f32.mrb[0].mxu0
        %v653 = vadd.f32 %v531, %v652
        %v654 = vpop.f32.mrb[0].mxu0
        %v655 = vadd.f32 %v535, %v654
        %656 = vmatprep.mubr.f32.mxu0 0.0
        %657 = vmatmul.mubr.f32.gmra.mrb[0].mxu0 %v487
        %v658 = vpop.f32.mrb[0].mxu0
        %v659 = vadd.f32 %v531, %v658
        %v660 = vpop.f32.mrb[0].mxu0
        %v661 = vadd.f32 %v535, %v660
        %662 = vmatprep.mubr.f32.mxu0 0.0
        %663 = vmatmul.mubr.f32.gmra.mrb[0].mxu0 %v488
        %v664 = vpop.f32.mrb[0].mxu0
        %v665 = vadd.f32 %v531, %v664
        %v666 = vpop.f32.mrb[0].mxu0
        %v667 = vadd.f32 %v535, %v666
        %668 = vmatprep.mubr.f32.mxu0 0.0
        %669 = vmatmul.mubr.f32.gmra.mrb[0].mxu0 %v489
        %v670 = vpop.f32.mrb[0].mxu0
        %v671 = vadd.f32 %v531, %v670
        %v672 = vpop.f32.mrb[0].mxu0
        %v673 = vadd.f32 %v535, %v672
        %674 = vmatprep.mubr.f32.mxu0 0.0
        %675 = vmatmul.mubr.f32.gmra.mrb[0].mxu0 %v490
        %v676 = vpop.f32.mrb[0].mxu0
        %v677 = vadd.f32 %v531, %v676
        %v678 = vpop.f32.mrb[0].mxu0
        %v679 = vadd.f32 %v535, %v678
        %680 = vmatprep.mubr.f32.mxu0 0.0
        %681 = vmatmul.mubr.f32.gmra.mrb[0].mxu0 %v491
        %v682 = vpop.f32.mrb[0].mxu0
        %v683 = vadd.f32 %v531, %v682
        %v684 = vpop.f32.mrb[0].mxu0
        %v685 = vadd.f32 %v535, %v684
        %686 = vmatprep.mubr.f32.mxu0 0.0
        %687 = vmatmul.mubr.f32.gmra.mrb[0].mxu0 %v492
        %v688 = vpop.f32.mrb[0].mxu0
        %v689 = vadd.f32 %v531, %v688
        %v690 = vpop.f32.mrb[0].mxu0
        %v691 = vadd.f32 %v535, %v690
        %692 = vmatprep.mubr.f32.mxu0 0.0
        %693 = vmatmul.mubr.f32.gmra.mrb[0].mxu0 %v493
        %v694 = vpop.f32.mrb[0].mxu0
        %v695 = vadd.f32 %v531, %v694
        %v696 = vpop.f32.mrb[0].mxu0
        %v697 = vadd.f32 %v535, %v696
        %698 = vdwg.mxu0
        %s699 = smul.u32 %s32, 256
        %s700 = sshra.s32 %s699, 7
        %s701 = sand.u32 %s699, 127
        %s702 = smul.addr %s700, 8
        %s703 = scalar_lea.vmem [#allocation3], %s702
        %704 = vst [vmem:[%s703] sm:$0xff] %v605
        %705 = vst [vmem:[%s703 + $0x8] sm:$0xff] %v607
        %706 = vst [vmem:[%s703 + $0x20] sm:$0xff] %v611
        %707 = vst [vmem:[%s703 + $0x28] sm:$0xff] %v613
        %708 = vst [vmem:[%s703 + $0x40] sm:$0xff] %v617
        %709 = vst [vmem:[%s703 + $0x48] sm:$0xff] %v619
        %710 = vst [vmem:[%s703 + $0x60] sm:$0xff] %v623
        %711 = vst [vmem:[%s703 + $0x68] sm:$0xff] %v625
        %712 = vst [vmem:[%s703 + $0x80] sm:$0xff] %v629
        %713 = vst [vmem:[%s703 + $0x88] sm:$0xff] %v631
        %714 = vst [vmem:[%s703 + $0xa0] sm:$0xff] %v635
        %715 = vst [vmem:[%s703 + $0xa8] sm:$0xff] %v637
        %716 = vst [vmem:[%s703 + $0xc0] sm:$0xff] %v641
        %717 = vst [vmem:[%s703 + $0xc8] sm:$0xff] %v643
        %718 = vst [vmem:[%s703 + $0xe0] sm:$0xff] %v647
        %719 = vst [vmem:[%s703 + $0xe8] sm:$0xff] %v649
        %720 = vst [vmem:[%s703 + $0x100] sm:$0xff] %v653
        %721 = vst [vmem:[%s703 + $0x108] sm:$0xff] %v655
        %722 = vst [vmem:[%s703 + $0x120] sm:$0xff] %v659
        %723 = vst [vmem:[%s703 + $0x128] sm:$0xff] %v661
        %724 = vst [vmem:[%s703 + $0x140] sm:$0xff] %v665
        %725 = vst [vmem:[%s703 + $0x148] sm:$0xff] %v667
        %726 = vst [vmem:[%s703 + $0x160] sm:$0xff] %v671
        %727 = vst [vmem:[%s703 + $0x168] sm:$0xff] %v673
        %728 = vst [vmem:[%s703 + $0x180] sm:$0xff] %v677
        %729 = vst [vmem:[%s703 + $0x188] sm:$0xff] %v679
        %730 = vst [vmem:[%s703 + $0x1a0] sm:$0xff] %v683
        %731 = vst [vmem:[%s703 + $0x1a8] sm:$0xff] %v685
        %732 = vst [vmem:[%s703 + $0x1c0] sm:$0xff] %v689
        %733 = vst [vmem:[%s703 + $0x1c8] sm:$0xff] %v691
        %734 = vst [vmem:[%s703 + $0x1e0] sm:$0xff] %v695
        %735 = vst [vmem:[%s703 + $0x1e8] sm:$0xff] %v697
        %v736 = vmul.f32 %v605, 0.5
        %v737 = vmul.f32 %v607, 0.5
        %v738 = vmul.f32 %v611, 0.5
        %v739 = vmul.f32 %v613, 0.5
        %v740 = vmul.f32 %v617, 0.5
        %v741 = vmul.f32 %v619, 0.5
        %v742 = vmul.f32 %v623, 0.5
        %v743 = vmul.f32 %v625, 0.5
        %v744 = vmul.f32 %v629, 0.5
        %v745 = vmul.f32 %v631, 0.5
        %v746 = vmul.f32 %v635, 0.5
        %v747 = vmul.f32 %v637, 0.5
        %v748 = vmul.f32 %v641, 0.5
        %v749 = vmul.f32 %v643, 0.5
        %v750 = vmul.f32 %v647, 0.5
        %v751 = vmul.f32 %v649, 0.5
        %v752 = vmul.f32 %v653, 0.5
        %v753 = vmul.f32 %v655, 0.5
        %v754 = vmul.f32 %v659, 0.5
        %v755 = vmul.f32 %v661, 0.5
        %v756 = vmul.f32 %v665, 0.5
        %v757 = vmul.f32 %v667, 0.5
        %v758 = vmul.f32 %v671, 0.5
        %v759 = vmul.f32 %v673, 0.5
        %v760 = vmul.f32 %v677, 0.5
        %v761 = vmul.f32 %v679, 0.5
        %v762 = vmul.f32 %v683, 0.5
        %v763 = vmul.f32 %v685, 0.5
        %v764 = vmul.f32 %v689, 0.5
        %v765 = vmul.f32 %v691, 0.5
        %v766 = vmul.f32 %v695, 0.5
        %v767 = vmul.f32 %v697, 0.5
        %v768 = vmul.f32 %v605, 0.70710677
        %v769 = vmul.f32 %v607, 0.70710677
        %v770 = vmul.f32 %v611, 0.70710677
        %v771 = vmul.f32 %v613, 0.70710677
        %v772 = vmul.f32 %v617, 0.70710677
        %v773 = vmul.f32 %v619, 0.70710677
        %v774 = vmul.f32 %v623, 0.70710677
        %v775 = vmul.f32 %v625, 0.70710677
        %v776 = vmul.f32 %v629, 0.70710677
        %v777 = vmul.f32 %v631, 0.70710677
        %v778 = vmul.f32 %v635, 0.70710677
        %v779 = vmul.f32 %v637, 0.70710677
        %v780 = vmul.f32 %v641, 0.70710677
        %v781 = vmul.f32 %v643, 0.70710677
        %v782 = vmul.f32 %v647, 0.70710677
        %v783 = vmul.f32 %v649, 0.70710677
        %v784 = vmul.f32 %v653, 0.70710677
        %v785 = vmul.f32 %v655, 0.70710677
        %v786 = vmul.f32 %v659, 0.70710677
        %v787 = vmul.f32 %v661, 0.70710677
        %v788 = vmul.f32 %v665, 0.70710677
        %v789 = vmul.f32 %v667, 0.70710677
        %v790 = vmul.f32 %v671, 0.70710677
        %v791 = vmul.f32 %v673, 0.70710677
        %v792 = vmul.f32 %v677, 0.70710677
        %v793 = vmul.f32 %v679, 0.70710677
        %v794 = vmul.f32 %v683, 0.70710677
        %v795 = vmul.f32 %v685, 0.70710677
        %v796 = vmul.f32 %v689, 0.70710677
        %v797 = vmul.f32 %v691, 0.70710677
        %v798 = vmul.f32 %v695, 0.70710677
        %v799 = vmul.f32 %v697, 0.70710677
        %v800 = verf.f32.pop %v768
        %v801 = verf.f32.pop %v769
        %v802 = verf.f32.pop %v770
        %v803 = verf.f32.pop %v771
        %v804 = verf.f32.pop %v772
        %v805 = verf.f32.pop %v773
        %v806 = verf.f32.pop %v774
        %v807 = verf.f32.pop %v775
        %v808 = verf.f32.pop %v776
        %v809 = verf.f32.pop %v777
        %v810 = verf.f32.pop %v778
        %v811 = verf.f32.pop %v779
        %v812 = verf.f32.pop %v780
        %v813 = verf.f32.pop %v781
        %v814 = verf.f32.pop %v782
        %v815 = verf.f32.pop %v783
        %v816 = verf.f32.pop %v784
        %v817 = verf.f32.pop %v785
        %v818 = verf.f32.pop %v786
        %v819 = verf.f32.pop %v787
        %v820 = verf.f32.pop %v788
        %v821 = verf.f32.pop %v789
        %v822 = verf.f32.pop %v790
        %v823 = verf.f32.pop %v791
        %v824 = verf.f32.pop %v792
        %v825 = verf.f32.pop %v793
        %v826 = verf.f32.pop %v794
        %v827 = verf.f32.pop %v795
        %v828 = verf.f32.pop %v796
        %v829 = verf.f32.pop %v797
        %v830 = verf.f32.pop %v798
        %v831 = verf.f32.pop %v799
        %v832 = vadd.f32 %v800, 1.0
        %v833 = vadd.f32 %v801, 1.0
        %v834 = vadd.f32 %v802, 1.0
        %v835 = vadd.f32 %v803, 1.0
        %v836 = vadd.f32 %v804, 1.0
        %v837 = vadd.f32 %v805, 1.0
        %v838 = vadd.f32 %v806, 1.0
        %v839 = vadd.f32 %v807, 1.0
        %v840 = vadd.f32 %v808, 1.0
        %v841 = vadd.f32 %v809, 1.0
        %v842 = vadd.f32 %v810, 1.0
        %v843 = vadd.f32 %v811, 1.0
        %v844 = vadd.f32 %v812, 1.0
        %v845 = vadd.f32 %v813, 1.0
        %v846 = vadd.f32 %v814, 1.0
        %v847 = vadd.f32 %v815, 1.0
        %v848 = vadd.f32 %v816, 1.0
        %v849 = vadd.f32 %v817, 1.0
        %v850 = vadd.f32 %v818, 1.0
        %v851 = vadd.f32 %v819, 1.0
        %v852 = vadd.f32 %v820, 1.0
        %v853 = vadd.f32 %v821, 1.0
        %v854 = vadd.f32 %v822, 1.0
        %v855 = vadd.f32 %v823, 1.0
        %v856 = vadd.f32 %v824, 1.0
        %v857 = vadd.f32 %v825, 1.0
        %v858 = vadd.f32 %v826, 1.0
        %v859 = vadd.f32 %v827, 1.0
        %v860 = vadd.f32 %v828, 1.0
        %v861 = vadd.f32 %v829, 1.0
        %v862 = vadd.f32 %v830, 1.0
        %v863 = vadd.f32 %v831, 1.0
        %v864 = vmul.f32 %v736, %v832
        %v865 = vmul.f32 %v737, %v833
        %v866 = vmul.f32 %v738, %v834
        %v867 = vmul.f32 %v739, %v835
        %v868 = vmul.f32 %v740, %v836
        %v869 = vmul.f32 %v741, %v837
        %v870 = vmul.f32 %v742, %v838
        %v871 = vmul.f32 %v743, %v839
        %v872 = vmul.f32 %v744, %v840
        %v873 = vmul.f32 %v745, %v841
        %v874 = vmul.f32 %v746, %v842
        %v875 = vmul.f32 %v747, %v843
        %v876 = vmul.f32 %v748, %v844
        %v877 = vmul.f32 %v749, %v845
        %v878 = vmul.f32 %v750, %v846
        %v879 = vmul.f32 %v751, %v847
        %v880 = vmul.f32 %v752, %v848
        %v881 = vmul.f32 %v753, %v849
        %v882 = vmul.f32 %v754, %v850
        %v883 = vmul.f32 %v755, %v851
        %v884 = vmul.f32 %v756, %v852
        %v885 = vmul.f32 %v757, %v853
        %v886 = vmul.f32 %v758, %v854
        %v887 = vmul.f32 %v759, %v855
        %v888 = vmul.f32 %v760, %v856
        %v889 = vmul.f32 %v761, %v857
        %v890 = vmul.f32 %v762, %v858
        %v891 = vmul.f32 %v763, %v859
        %v892 = vmul.f32 %v764, %v860
        %v893 = vmul.f32 %v765, %v861
        %v894 = vmul.f32 %v766, %v862
        %v895 = vmul.f32 %v767, %v863
        %v896 = vld [vmem:[#allocation2] sm:$0xff]
        %v897 = vld [vmem:[#allocation2 + $0x8] sm:$0xff]
        %v898 = vld [vmem:[#allocation2 + $0x10] sm:$0xff]
        %v899 = vld [vmem:[#allocation2 + $0x18] sm:$0xff]
        %v900 = vld [vmem:[#allocation2 + $0x20] sm:$0xff]
        %v901 = vld [vmem:[#allocation2 + $0x28] sm:$0xff]
        %v902 = vld [vmem:[#allocation2 + $0x30] sm:$0xff]
        %v903 = vld [vmem:[#allocation2 + $0x38] sm:$0xff]
        %v904 = vld [vmem:[#allocation2 + $0x40] sm:$0xff]
        %v905 = vld [vmem:[#allocation2 + $0x48] sm:$0xff]
        %v906 = vld [vmem:[#allocation2 + $0x50] sm:$0xff]
        %v907 = vld [vmem:[#allocation2 + $0x58] sm:$0xff]
        %v908 = vld [vmem:[#allocation2 + $0x60] sm:$0xff]
        %v909 = vld [vmem:[#allocation2 + $0x68] sm:$0xff]
        %v910 = vld [vmem:[#allocation2 + $0x70] sm:$0xff]
        %v911 = vld [vmem:[#allocation2 + $0x78] sm:$0xff]
        %v912 = vld [vmem:[#allocation2 + $0x80] sm:$0xff]
        %v913 = vld [vmem:[#allocation2 + $0x88] sm:$0xff]
        %v914 = vld [vmem:[#allocation2 + $0x90] sm:$0xff]
        %v915 = vld [vmem:[#allocation2 + $0x98] sm:$0xff]
        %v916 = vld [vmem:[#allocation2 + $0xa0] sm:$0xff]
        %v917 = vld [vmem:[#allocation2 + $0xa8] sm:$0xff]
        %v918 = vld [vmem:[#allocation2 + $0xb0] sm:$0xff]
        %v919 = vld [vmem:[#allocation2 + $0xb8] sm:$0xff]
        %v920 = vld [vmem:[#allocation2 + $0xc0] sm:$0xff]
        %v921 = vld [vmem:[#allocation2 + $0xc8] sm:$0xff]
        %v922 = vld [vmem:[#allocation2 + $0xd0] sm:$0xff]
        %v923 = vld [vmem:[#allocation2 + $0xd8] sm:$0xff]
        %v924 = vld [vmem:[#allocation2 + $0xe0] sm:$0xff]
        %v925 = vld [vmem:[#allocation2 + $0xe8] sm:$0xff]
        %v926 = vld [vmem:[#allocation2 + $0xf0] sm:$0xff]
        %v927 = vld [vmem:[#allocation2 + $0xf8] sm:$0xff]
        %v928 = vld [vmem:[#allocation2 + $0x100] sm:$0xff]
        %v929 = vld [vmem:[#allocation2 + $0x108] sm:$0xff]
        %v930 = vld [vmem:[#allocation2 + $0x110] sm:$0xff]
        %v931 = vld [vmem:[#allocation2 + $0x118] sm:$0xff]
        %v932 = vld [vmem:[#allocation2 + $0x120] sm:$0xff]
        %v933 = vld [vmem:[#allocation2 + $0x128] sm:$0xff]
        %v934 = vld [vmem:[#allocation2 + $0x130] sm:$0xff]
        %v935 = vld [vmem:[#allocation2 + $0x138] sm:$0xff]
        %v936 = vld [vmem:[#allocation2 + $0x140] sm:$0xff]
        %v937 = vld [vmem:[#allocation2 + $0x148] sm:$0xff]
        %v938 = vld [vmem:[#allocation2 + $0x150] sm:$0xff]
        %v939 = vld [vmem:[#allocation2 + $0x158] sm:$0xff]
        %v940 = vld [vmem:[#allocation2 + $0x160] sm:$0xff]
        %v941 = vld [vmem:[#allocation2 + $0x168] sm:$0xff]
        %v942 = vld [vmem:[#allocation2 + $0x170] sm:$0xff]
        %v943 = vld [vmem:[#allocation2 + $0x178] sm:$0xff]
        %v944 = vld [vmem:[#allocation2 + $0x180] sm:$0xff]
        %v945 = vld [vmem:[#allocation2 + $0x188] sm:$0xff]
        %v946 = vld [vmem:[#allocation2 + $0x190] sm:$0xff]
        %v947 = vld [vmem:[#allocation2 + $0x198] sm:$0xff]
        %v948 = vld [vmem:[#allocation2 + $0x1a0] sm:$0xff]
        %v949 = vld [vmem:[#allocation2 + $0x1a8] sm:$0xff]
        %v950 = vld [vmem:[#allocation2 + $0x1b0] sm:$0xff]
        %v951 = vld [vmem:[#allocation2 + $0x1b8] sm:$0xff]
        %v952 = vld [vmem:[#allocation2 + $0x1c0] sm:$0xff]
        %v953 = vld [vmem:[#allocation2 + $0x1c8] sm:$0xff]
        %v954 = vld [vmem:[#allocation2 + $0x1d0] sm:$0xff]
        %v955 = vld [vmem:[#allocation2 + $0x1d8] sm:$0xff]
        %v956 = vld [vmem:[#allocation2 + $0x1e0] sm:$0xff]
        %v957 = vld [vmem:[#allocation2 + $0x1e8] sm:$0xff]
        %v958 = vld [vmem:[#allocation2 + $0x1f0] sm:$0xff]
        %v959 = vld [vmem:[#allocation2 + $0x1f8] sm:$0xff]
        %v960 = vld [vmem:[%s356] sm:$0xff]
        %v961 = vld [vmem:[%s356 + $0x8] sm:$0xff]
        %v962 = vld [vmem:[%s356 + $0x10] sm:$0xff]
        %v963 = vld [vmem:[%s356 + $0x18] sm:$0xff]
        %v964 = vld [vmem:[%s356 + $0x20] sm:$0xff]
        %v965 = vld [vmem:[%s356 + $0x28] sm:$0xff]
        %v966 = vld [vmem:[%s356 + $0x30] sm:$0xff]
        %v967 = vld [vmem:[%s356 + $0x38] sm:$0xff]
        %v968 = vld [vmem:[%s356 + $0x40] sm:$0xff]
        %v969 = vld [vmem:[%s356 + $0x48] sm:$0xff]
        %v970 = vld [vmem:[%s356 + $0x50] sm:$0xff]
        %v971 = vld [vmem:[%s356 + $0x58] sm:$0xff]
        %v972 = vld [vmem:[%s356 + $0x60] sm:$0xff]
        %v973 = vld [vmem:[%s356 + $0x68] sm:$0xff]
        %v974 = vld [vmem:[%s356 + $0x70] sm:$0xff]
        %v975 = vld [vmem:[%s356 + $0x78] sm:$0xff]
        %v976 = vld [vmem:[%s356 + $0x80] sm:$0xff]
        %v977 = vld [vmem:[%s356 + $0x88] sm:$0xff]
        %v978 = vld [vmem:[%s356 + $0x90] sm:$0xff]
        %v979 = vld [vmem:[%s356 + $0x98] sm:$0xff]
        %v980 = vld [vmem:[%s356 + $0xa0] sm:$0xff]
        %v981 = vld [vmem:[%s356 + $0xa8] sm:$0xff]
        %v982 = vld [vmem:[%s356 + $0xb0] sm:$0xff]
        %v983 = vld [vmem:[%s356 + $0xb8] sm:$0xff]
        %v984 = vld [vmem:[%s356 + $0xc0] sm:$0xff]
        %v985 = vld [vmem:[%s356 + $0xc8] sm:$0xff]
        %v986 = vld [vmem:[%s356 + $0xd0] sm:$0xff]
        %v987 = vld [vmem:[%s356 + $0xd8] sm:$0xff]
        %v988 = vld [vmem:[%s356 + $0xe0] sm:$0xff]
        %v989 = vld [vmem:[%s356 + $0xe8] sm:$0xff]
        %v990 = vld [vmem:[%s356 + $0xf0] sm:$0xff]
        %v991 = vld [vmem:[%s356 + $0xf8] sm:$0xff]
        %v992 = vld [vmem:[%s356 + $0x100] sm:$0xff]
        %v993 = vld [vmem:[%s356 + $0x108] sm:$0xff]
        %v994 = vld [vmem:[%s356 + $0x110] sm:$0xff]
        %v995 = vld [vmem:[%s356 + $0x118] sm:$0xff]
        %v996 = vld [vmem:[%s356 + $0x120] sm:$0xff]
        %v997 = vld [vmem:[%s356 + $0x128] sm:$0xff]
        %v998 = vld [vmem:[%s356 + $0x130] sm:$0xff]
        %v999 = vld [vmem:[%s356 + $0x138] sm:$0xff]
        %v1000 = vld [vmem:[%s356 + $0x140] sm:$0xff]
        %v1001 = vld [vmem:[%s356 + $0x148] sm:$0xff]
        %v1002 = vld [vmem:[%s356 + $0x150] sm:$0xff]
        %v1003 = vld [vmem:[%s356 + $0x158] sm:$0xff]
        %v1004 = vld [vmem:[%s356 + $0x160] sm:$0xff]
        %v1005 = vld [vmem:[%s356 + $0x168] sm:$0xff]
        %v1006 = vld [vmem:[%s356 + $0x170] sm:$0xff]
        %v1007 = vld [vmem:[%s356 + $0x178] sm:$0xff]
        %v1008 = vld [vmem:[%s356 + $0x180] sm:$0xff]
        %v1009 = vld [vmem:[%s356 + $0x188] sm:$0xff]
        %v1010 = vld [vmem:[%s356 + $0x190] sm:$0xff]
        %v1011 = vld [vmem:[%s356 + $0x198] sm:$0xff]
        %v1012 = vld [vmem:[%s356 + $0x1a0] sm:$0xff]
        %v1013 = vld [vmem:[%s356 + $0x1a8] sm:$0xff]
        %v1014 = vld [vmem:[%s356 + $0x1b0] sm:$0xff]
        %v1015 = vld [vmem:[%s356 + $0x1b8] sm:$0xff]
        %v1016 = vld [vmem:[%s356 + $0x1c0] sm:$0xff]
        %v1017 = vld [vmem:[%s356 + $0x1c8] sm:$0xff]
        %v1018 = vld [vmem:[%s356 + $0x1d0] sm:$0xff]
        %v1019 = vld [vmem:[%s356 + $0x1d8] sm:$0xff]
        %v1020 = vld [vmem:[%s356 + $0x1e0] sm:$0xff]
        %v1021 = vld [vmem:[%s356 + $0x1e8] sm:$0xff]
        %v1022 = vld [vmem:[%s356 + $0x1f0] sm:$0xff]
        %v1023 = vld [vmem:[%s356 + $0x1f8] sm:$0xff]
        %v1024 = vld [vmem:[%s356 + $0x200] sm:$0xff]
        %v1025 = vld [vmem:[%s356 + $0x208] sm:$0xff]
        %v1026 = vld [vmem:[%s356 + $0x210] sm:$0xff]
        %v1027 = vld [vmem:[%s356 + $0x218] sm:$0xff]
        %v1028 = vld [vmem:[%s356 + $0x220] sm:$0xff]
        %v1029 = vld [vmem:[%s356 + $0x228] sm:$0xff]
        %v1030 = vld [vmem:[%s356 + $0x230] sm:$0xff]
        %v1031 = vld [vmem:[%s356 + $0x238] sm:$0xff]
        %v1032 = vld [vmem:[%s356 + $0x240] sm:$0xff]
        %v1033 = vld [vmem:[%s356 + $0x248] sm:$0xff]
        %v1034 = vld [vmem:[%s356 + $0x250] sm:$0xff]
        %v1035 = vld [vmem:[%s356 + $0x258] sm:$0xff]
        %v1036 = vld [vmem:[%s356 + $0x260] sm:$0xff]
        %v1037 = vld [vmem:[%s356 + $0x268] sm:$0xff]
        %v1038 = vld [vmem:[%s356 + $0x270] sm:$0xff]
        %v1039 = vld [vmem:[%s356 + $0x278] sm:$0xff]
        %v1040 = vld [vmem:[%s356 + $0x280] sm:$0xff]
        %v1041 = vld [vmem:[%s356 + $0x288] sm:$0xff]
        %v1042 = vld [vmem:[%s356 + $0x290] sm:$0xff]
        %v1043 = vld [vmem:[%s356 + $0x298] sm:$0xff]
        %v1044 = vld [vmem:[%s356 + $0x2a0] sm:$0xff]
        %v1045 = vld [vmem:[%s356 + $0x2a8] sm:$0xff]
        %v1046 = vld [vmem:[%s356 + $0x2b0] sm:$0xff]
        %v1047 = vld [vmem:[%s356 + $0x2b8] sm:$0xff]
        %v1048 = vld [vmem:[%s356 + $0x2c0] sm:$0xff]
        %v1049 = vld [vmem:[%s356 + $0x2c8] sm:$0xff]
        %v1050 = vld [vmem:[%s356 + $0x2d0] sm:$0xff]
        %v1051 = vld [vmem:[%s356 + $0x2d8] sm:$0xff]
        %v1052 = vld [vmem:[%s356 + $0x2e0] sm:$0xff]
        %v1053 = vld [vmem:[%s356 + $0x2e8] sm:$0xff]
        %v1054 = vld [vmem:[%s356 + $0x2f0] sm:$0xff]
        %v1055 = vld [vmem:[%s356 + $0x2f8] sm:$0xff]
        %v1056 = vld [vmem:[%s356 + $0x300] sm:$0xff]
        %v1057 = vld [vmem:[%s356 + $0x308] sm:$0xff]
        %v1058 = vld [vmem:[%s356 + $0x310] sm:$0xff]
        %v1059 = vld [vmem:[%s356 + $0x318] sm:$0xff]
        %v1060 = vld [vmem:[%s356 + $0x320] sm:$0xff]
        %v1061 = vld [vmem:[%s356 + $0x328] sm:$0xff]
        %v1062 = vld [vmem:[%s356 + $0x330] sm:$0xff]
        %v1063 = vld [vmem:[%s356 + $0x338] sm:$0xff]
        %v1064 = vld [vmem:[%s356 + $0x340] sm:$0xff]
        %v1065 = vld [vmem:[%s356 + $0x348] sm:$0xff]
        %v1066 = vld [vmem:[%s356 + $0x350] sm:$0xff]
        %v1067 = vld [vmem:[%s356 + $0x358] sm:$0xff]
        %v1068 = vld [vmem:[%s356 + $0x360] sm:$0xff]
        %v1069 = vld [vmem:[%s356 + $0x368] sm:$0xff]
        %v1070 = vld [vmem:[%s356 + $0x370] sm:$0xff]
        %v1071 = vld [vmem:[%s356 + $0x378] sm:$0xff]
        %v1072 = vld [vmem:[%s356 + $0x380] sm:$0xff]
        %v1073 = vld [vmem:[%s356 + $0x388] sm:$0xff]
        %v1074 = vld [vmem:[%s356 + $0x390] sm:$0xff]
        %v1075 = vld [vmem:[%s356 + $0x398] sm:$0xff]
        %v1076 = vld [vmem:[%s356 + $0x3a0] sm:$0xff]
        %v1077 = vld [vmem:[%s356 + $0x3a8] sm:$0xff]
        %v1078 = vld [vmem:[%s356 + $0x3b0] sm:$0xff]
        %v1079 = vld [vmem:[%s356 + $0x3b8] sm:$0xff]
        %v1080 = vld [vmem:[%s356 + $0x3c0] sm:$0xff]
        %v1081 = vld [vmem:[%s356 + $0x3c8] sm:$0xff]
        %v1082 = vld [vmem:[%s356 + $0x3d0] sm:$0xff]
        %v1083 = vld [vmem:[%s356 + $0x3d8] sm:$0xff]
        %v1084 = vld [vmem:[%s356 + $0x3e0] sm:$0xff]
        %v1085 = vld [vmem:[%s356 + $0x3e8] sm:$0xff]
        %v1086 = vld [vmem:[%s356 + $0x3f0] sm:$0xff]
        %v1087 = vld [vmem:[%s356 + $0x3f8] sm:$0xff]
        %1088 = vmatprep.subr.mxu0 %v961
        %1089 = vmatpush1.msra.mxu0 %v960
        %1090 = vmatprep.subr.mxu0 %v965
        %1091 = vmatpush1.msra.mxu0 %v964
        %1092 = vmatprep.subr.mxu0 %v969
        %1093 = vmatpush1.msra.mxu0 %v968
        %1094 = vmatprep.subr.mxu0 %v973
        %1095 = vmatpush1.msra.mxu0 %v972
        %1096 = vmatprep.subr.mxu0 %v977
        %1097 = vmatpush1.msra.mxu0 %v976
        %1098 = vmatprep.subr.mxu0 %v981
        %1099 = vmatpush1.msra.mxu0 %v980
        %1100 = vmatprep.subr.mxu0 %v985
        %1101 = vmatpush1.msra.mxu0 %v984
        %1102 = vmatprep.subr.mxu0 %v989
        %1103 = vmatpush1.msra.mxu0 %v988
        %1104 = vmatprep.subr.mxu0 %v993
        %1105 = vmatpush1.msra.mxu0 %v992
        %1106 = vmatprep.subr.mxu0 %v997
        %1107 = vmatpush1.msra.mxu0 %v996
        %1108 = vmatprep.subr.mxu0 %v1001
        %1109 = vmatpush1.msra.mxu0 %v1000
        %1110 = vmatprep.subr.mxu0 %v1005
        %1111 = vmatpush1.msra.mxu0 %v1004
        %1112 = vmatprep.subr.mxu0 %v1009
        %1113 = vmatpush1.msra.mxu0 %v1008
        %1114 = vmatprep.subr.mxu0 %v1013
        %1115 = vmatpush1.msra.mxu0 %v1012
        %1116 = vmatprep.subr.mxu0 %v1017
        %1117 = vmatpush1.msra.mxu0 %v1016
        %1118 = vmatprep.subr.mxu0 %v1021
        %1119 = vmatpush1.msra.mxu0 %v1020
        %1120 = vmatprep.subr.mxu0 %v1025
        %1121 = vmatpush1.msra.mxu0 %v1024
        %1122 = vmatprep.subr.mxu0 %v1029
        %1123 = vmatpush1.msra.mxu0 %v1028
        %1124 = vmatprep.subr.mxu0 %v1033
        %1125 = vmatpush1.msra.mxu0 %v1032
        %1126 = vmatprep.subr.mxu0 %v1037
        %1127 = vmatpush1.msra.mxu0 %v1036
        %1128 = vmatprep.subr.mxu0 %v1041
        %1129 = vmatpush1.msra.mxu0 %v1040
        %1130 = vmatprep.subr.mxu0 %v1045
        %1131 = vmatpush1.msra.mxu0 %v1044
        %1132 = vmatprep.subr.mxu0 %v1049
        %1133 = vmatpush1.msra.mxu0 %v1048
        %1134 = vmatprep.subr.mxu0 %v1053
        %1135 = vmatpush1.msra.mxu0 %v1052
        %1136 = vmatprep.subr.mxu0 %v1057
        %1137 = vmatpush1.msra.mxu0 %v1056
        %1138 = vmatprep.subr.mxu0 %v1061
        %1139 = vmatpush1.msra.mxu0 %v1060
        %1140 = vmatprep.subr.mxu0 %v1065
        %1141 = vmatpush1.msra.mxu0 %v1064
        %1142 = vmatprep.subr.mxu0 %v1069
        %1143 = vmatpush1.msra.mxu0 %v1068
        %1144 = vmatprep.subr.mxu0 %v1073
        %1145 = vmatpush1.msra.mxu0 %v1072
        %1146 = vmatprep.subr.mxu0 %v1077
        %1147 = vmatpush1.msra.mxu0 %v1076
        %1148 = vmatprep.subr.mxu0 %v1081
        %1149 = vmatpush1.msra.mxu0 %v1080
        %1150 = vmatprep.subr.mxu0 %v1085
        %1151 = vmatpush1.msra.mxu0 %v1084
        %1152 = vmatprep.mubr.f32.mxu0 %v865
        %1153 = vmatmul.mubr.f32.gmra.mrb[0].mxu0 %v864
        %v1154 = vpop.f32.mrb[0].mxu0
        %v1155 = vadd.f32 0.0, %v1154
        %v1156 = vpop.f32.mrb[0].mxu0
        %v1157 = vadd.f32 0.0, %v1156
        %1158 = vmatprep.mubr.f32.mxu0 %v867
        %1159 = vmatmul.mubr.f32.gmra.mrb[0].mxu0 %v866
        %v1160 = vpop.f32.mrb[0].mxu0
        %v1161 = vadd.f32 0.0, %v1160
        %v1162 = vpop.f32.mrb[0].mxu0
        %v1163 = vadd.f32 0.0, %v1162
        %1164 = vmatprep.mubr.f32.mxu0 %v869
        %1165 = vmatmul.mubr.f32.gmra.mrb[0].mxu0 %v868
        %v1166 = vpop.f32.mrb[0].mxu0
        %v1167 = vadd.f32 0.0, %v1166
        %v1168 = vpop.f32.mrb[0].mxu0
        %v1169 = vadd.f32 0.0, %v1168
        %1170 = vmatprep.mubr.f32.mxu0 %v871
        %1171 = vmatmul.mubr.f32.gmra.mrb[0].mxu0 %v870
        %v1172 = vpop.f32.mrb[0].mxu0
        %v1173 = vadd.f32 0.0, %v1172
        %v1174 = vpop.f32.mrb[0].mxu0
        %v1175 = vadd.f32 0.0, %v1174
        %1176 = vmatprep.mubr.f32.mxu0 %v873
        %1177 = vmatmul.mubr.f32.gmra.mrb[0].mxu0 %v872
        %v1178 = vpop.f32.mrb[0].mxu0
        %v1179 = vadd.f32 0.0, %v1178
        %v1180 = vpop.f32.mrb[0].mxu0
        %v1181 = vadd.f32 0.0, %v1180
        %1182 = vmatprep.mubr.f32.mxu0 %v875
        %1183 = vmatmul.mubr.f32.gmra.mrb[0].mxu0 %v874
        %v1184 = vpop.f32.mrb[0].mxu0
        %v1185 = vadd.f32 0.0, %v1184
        %v1186 = vpop.f32.mrb[0].mxu0
        %v1187 = vadd.f32 0.0, %v1186
        %1188 = vmatprep.mubr.f32.mxu0 %v877
        %1189 = vmatmul.mubr.f32.gmra.mrb[0].mxu0 %v876
        %v1190 = vpop.f32.mrb[0].mxu0
        %v1191 = vadd.f32 0.0, %v1190
        %v1192 = vpop.f32.mrb[0].mxu0
        %v1193 = vadd.f32 0.0, %v1192
        %1194 = vmatprep.mubr.f32.mxu0 %v879
        %1195 = vmatmul.mubr.f32.gmra.mrb[0].mxu0 %v878
        %v1196 = vpop.f32.mrb[0].mxu0
        %v1197 = vadd.f32 0.0, %v1196
        %v1198 = vpop.f32.mrb[0].mxu0
        %v1199 = vadd.f32 0.0, %v1198
        %1200 = vmatprep.mubr.f32.mxu0 %v881
        %1201 = vmatmul.mubr.f32.gmra.mrb[0].mxu0 %v880
        %v1202 = vpop.f32.mrb[0].mxu0
        %v1203 = vadd.f32 0.0, %v1202
        %v1204 = vpop.f32.mrb[0].mxu0
        %v1205 = vadd.f32 0.0, %v1204
        %1206 = vmatprep.mubr.f32.mxu0 %v883
        %1207 = vmatmul.mubr.f32.gmra.mrb[0].mxu0 %v882
        %v1208 = vpop.f32.mrb[0].mxu0
        %v1209 = vadd.f32 0.0, %v1208
        %v1210 = vpop.f32.mrb[0].mxu0
        %v1211 = vadd.f32 0.0, %v1210
        %1212 = vmatprep.mubr.f32.mxu0 %v885
        %1213 = vmatmul.mubr.f32.gmra.mrb[0].mxu0 %v884
        %v1214 = vpop.f32.mrb[0].mxu0
        %v1215 = vadd.f32 0.0, %v1214
        %v1216 = vpop.f32.mrb[0].mxu0
        %v1217 = vadd.f32 0.0, %v1216
        %1218 = vmatprep.mubr.f32.mxu0 %v887
        %1219 = vmatmul.mubr.f32.gmra.mrb[0].mxu0 %v886
        %v1220 = vpop.f32.mrb[0].mxu0
        %v1221 = vadd.f32 0.0, %v1220
        %v1222 = vpop.f32.mrb[0].mxu0
        %v1223 = vadd.f32 0.0, %v1222
        %1224 = vmatprep.mubr.f32.mxu0 %v889
        %1225 = vmatmul.mubr.f32.gmra.mrb[0].mxu0 %v888
        %v1226 = vpop.f32.mrb[0].mxu0
        %v1227 = vadd.f32 0.0, %v1226
        %v1228 = vpop.f32.mrb[0].mxu0
        %v1229 = vadd.f32 0.0, %v1228
        %1230 = vmatprep.mubr.f32.mxu0 %v891
        %1231 = vmatmul.mubr.f32.gmra.mrb[0].mxu0 %v890
        %v1232 = vpop.f32.mrb[0].mxu0
        %v1233 = vadd.f32 0.0, %v1232
        %v1234 = vpop.f32.mrb[0].mxu0
        %v1235 = vadd.f32 0.0, %v1234
        %1236 = vmatprep.mubr.f32.mxu0 %v893
        %1237 = vmatmul.mubr.f32.gmra.mrb[0].mxu0 %v892
        %v1238 = vpop.f32.mrb[0].mxu0
        %v1239 = vadd.f32 0.0, %v1238
        %v1240 = vpop.f32.mrb[0].mxu0
        %v1241 = vadd.f32 0.0, %v1240
        %1242 = vmatprep.mubr.f32.mxu0 %v895
        %1243 = vmatmul.mubr.f32.gmra.mrb[0].mxu0 %v894
        %v1244 = vpop.f32.mrb[0].mxu0
        %v1245 = vadd.f32 0.0, %v1244
        %v1246 = vpop.f32.mrb[0].mxu0
        %v1247 = vadd.f32 0.0, %v1246
        %1248 = vdwg.mxu0
        %1249 = vmatprep.subr.mxu0 %v963
        %1250 = vmatpush1.msra.mxu0 %v962
        %1251 = vmatprep.subr.mxu0 %v967
        %1252 = vmatpush1.msra.mxu0 %v966
        %1253 = vmatprep.subr.mxu0 %v971
        %1254 = vmatpush1.msra.mxu0 %v970
        %1255 = vmatprep.subr.mxu0 %v975
        %1256 = vmatpush1.msra.mxu0 %v974
        %1257 = vmatprep.subr.mxu0 %v979
        %1258 = vmatpush1.msra.mxu0 %v978
        %1259 = vmatprep.subr.mxu0 %v983
        %1260 = vmatpush1.msra.mxu0 %v982
        %1261 = vmatprep.subr.mxu0 %v987
        %1262 = vmatpush1.msra.mxu0 %v986
        %1263 = vmatprep.subr.mxu0 %v991
        %1264 = vmatpush1.msra.mxu0 %v990
        %1265 = vmatprep.subr.mxu0 %v995
        %1266 = vmatpush1.msra.mxu0 %v994
        %1267 = vmatprep.subr.mxu0 %v999
        %1268 = vmatpush1.msra.mxu0 %v998
        %1269 = vmatprep.subr.mxu0 %v1003
        %1270 = vmatpush1.msra.mxu0 %v1002
        %1271 = vmatprep.subr.mxu0 %v1007
        %1272 = vmatpush1.msra.mxu0 %v1006
        %1273 = vmatprep.subr.mxu0 %v1011
        %1274 = vmatpush1.msra.mxu0 %v1010
        %1275 = vmatprep.subr.mxu0 %v1015
        %1276 = vmatpush1.msra.mxu0 %v1014
        %1277 = vmatprep.subr.mxu0 %v1019
        %1278 = vmatpush1.msra.mxu0 %v1018
        %1279 = vmatprep.subr.mxu0 %v1023
        %1280 = vmatpush1.msra.mxu0 %v1022
        %1281 = vmatprep.subr.mxu0 %v1027
        %1282 = vmatpush1.msra.mxu0 %v1026
        %1283 = vmatprep.subr.mxu0 %v1031
        %1284 = vmatpush1.msra.mxu0 %v1030
        %1285 = vmatprep.subr.mxu0 %v1035
        %1286 = vmatpush1.msra.mxu0 %v1034
        %1287 = vmatprep.subr.mxu0 %v1039
        %1288 = vmatpush1.msra.mxu0 %v1038
        %1289 = vmatprep.subr.mxu0 %v1043
        %1290 = vmatpush1.msra.mxu0 %v1042
        %1291 = vmatprep.subr.mxu0 %v1047
        %1292 = vmatpush1.msra.mxu0 %v1046
        %1293 = vmatprep.subr.mxu0 %v1051
        %1294 = vmatpush1.msra.mxu0 %v1050
        %1295 = vmatprep.subr.mxu0 %v1055
        %1296 = vmatpush1.msra.mxu0 %v1054
        %1297 = vmatprep.subr.mxu0 %v1059
        %1298 = vmatpush1.msra.mxu0 %v1058
        %1299 = vmatprep.subr.mxu0 %v1063
        %1300 = vmatpush1.msra.mxu0 %v1062
        %1301 = vmatprep.subr.mxu0 %v1067
        %1302 = vmatpush1.msra.mxu0 %v1066
        %1303 = vmatprep.subr.mxu0 %v1071
        %1304 = vmatpush1.msra.mxu0 %v1070
        %1305 = vmatprep.subr.mxu0 %v1075
        %1306 = vmatpush1.msra.mxu0 %v1074
        %1307 = vmatprep.subr.mxu0 %v1079
        %1308 = vmatpush1.msra.mxu0 %v1078
        %1309 = vmatprep.subr.mxu0 %v1083
        %1310 = vmatpush1.msra.mxu0 %v1082
        %1311 = vmatprep.subr.mxu0 %v1087
        %1312 = vmatpush1.msra.mxu0 %v1086
        %1313 = vmatprep.mubr.f32.mxu0 %v865
        %1314 = vmatmul.mubr.f32.gmra.mrb[0].mxu0 %v864
        %v1315 = vpop.f32.mrb[0].mxu0
        %v1316 = vadd.f32 0.0, %v1315
        %v1317 = vpop.f32.mrb[0].mxu0
        %v1318 = vadd.f32 0.0, %v1317
        %1319 = vmatprep.mubr.f32.mxu0 %v867
        %1320 = vmatmul.mubr.f32.gmra.mrb[0].mxu0 %v866
        %v1321 = vpop.f32.mrb[0].mxu0
        %v1322 = vadd.f32 0.0, %v1321
        %v1323 = vpop.f32.mrb[0].mxu0
        %v1324 = vadd.f32 0.0, %v1323
        %1325 = vmatprep.mubr.f32.mxu0 %v869
        %1326 = vmatmul.mubr.f32.gmra.mrb[0].mxu0 %v868
        %v1327 = vpop.f32.mrb[0].mxu0
        %v1328 = vadd.f32 0.0, %v1327
        %v1329 = vpop.f32.mrb[0].mxu0
        %v1330 = vadd.f32 0.0, %v1329
        %1331 = vmatprep.mubr.f32.mxu0 %v871
        %1332 = vmatmul.mubr.f32.gmra.mrb[0].mxu0 %v870
        %v1333 = vpop.f32.mrb[0].mxu0
        %v1334 = vadd.f32 0.0, %v1333
        %v1335 = vpop.f32.mrb[0].mxu0
        %v1336 = vadd.f32 0.0, %v1335
        %1337 = vmatprep.mubr.f32.mxu0 %v873
        %1338 = vmatmul.mubr.f32.gmra.mrb[0].mxu0 %v872
        %v1339 = vpop.f32.mrb[0].mxu0
        %v1340 = vadd.f32 0.0, %v1339
        %v1341 = vpop.f32.mrb[0].mxu0
        %v1342 = vadd.f32 0.0, %v1341
        %1343 = vmatprep.mubr.f32.mxu0 %v875
        %1344 = vmatmul.mubr.f32.gmra.mrb[0].mxu0 %v874
        %v1345 = vpop.f32.mrb[0].mxu0
        %v1346 = vadd.f32 0.0, %v1345
        %v1347 = vpop.f32.mrb[0].mxu0
        %v1348 = vadd.f32 0.0, %v1347
        %1349 = vmatprep.mubr.f32.mxu0 %v877
        %1350 = vmatmul.mubr.f32.gmra.mrb[0].mxu0 %v876
        %v1351 = vpop.f32.mrb[0].mxu0
        %v1352 = vadd.f32 0.0, %v1351
        %v1353 = vpop.f32.mrb[0].mxu0
        %v1354 = vadd.f32 0.0, %v1353
        %1355 = vmatprep.mubr.f32.mxu0 %v879
        %1356 = vmatmul.mubr.f32.gmra.mrb[0].mxu0 %v878
        %v1357 = vpop.f32.mrb[0].mxu0
        %v1358 = vadd.f32 0.0, %v1357
        %v1359 = vpop.f32.mrb[0].mxu0
        %v1360 = vadd.f32 0.0, %v1359
        %1361 = vmatprep.mubr.f32.mxu0 %v881
        %1362 = vmatmul.mubr.f32.gmra.mrb[0].mxu0 %v880
        %v1363 = vpop.f32.mrb[0].mxu0
        %v1364 = vadd.f32 0.0, %v1363
        %v1365 = vpop.f32.mrb[0].mxu0
        %v1366 = vadd.f32 0.0, %v1365
        %1367 = vmatprep.mubr.f32.mxu0 %v883
        %1368 = vmatmul.mubr.f32.gmra.mrb[0].mxu0 %v882
        %v1369 = vpop.f32.mrb[0].mxu0
        %v1370 = vadd.f32 0.0, %v1369
        %v1371 = vpop.f32.mrb[0].mxu0
        %v1372 = vadd.f32 0.0, %v1371
        %1373 = vmatprep.mubr.f32.mxu0 %v885
        %1374 = vmatmul.mubr.f32.gmra.mrb[0].mxu0 %v884
        %v1375 = vpop.f32.mrb[0].mxu0
        %v1376 = vadd.f32 0.0, %v1375
        %v1377 = vpop.f32.mrb[0].mxu0
        %v1378 = vadd.f32 0.0, %v1377
        %1379 = vmatprep.mubr.f32.mxu0 %v887
        %1380 = vmatmul.mubr.f32.gmra.mrb[0].mxu0 %v886
        %v1381 = vpop.f32.mrb[0].mxu0
        %v1382 = vadd.f32 0.0, %v1381
        %v1383 = vpop.f32.mrb[0].mxu0
        %v1384 = vadd.f32 0.0, %v1383
        %1385 = vmatprep.mubr.f32.mxu0 %v889
        %1386 = vmatmul.mubr.f32.gmra.mrb[0].mxu0 %v888
        %v1387 = vpop.f32.mrb[0].mxu0
        %v1388 = vadd.f32 0.0, %v1387
        %v1389 = vpop.f32.mrb[0].mxu0
        %v1390 = vadd.f32 0.0, %v1389
        %1391 = vmatprep.mubr.f32.mxu0 %v891
        %1392 = vmatmul.mubr.f32.gmra.mrb[0].mxu0 %v890
        %v1393 = vpop.f32.mrb[0].mxu0
        %v1394 = vadd.f32 0.0, %v1393
        %v1395 = vpop.f32.mrb[0].mxu0
        %v1396 = vadd.f32 0.0, %v1395
        %1397 = vmatprep.mubr.f32.mxu0 %v893
        %1398 = vmatmul.mubr.f32.gmra.mrb[0].mxu0 %v892
        %v1399 = vpop.f32.mrb[0].mxu0
        %v1400 = vadd.f32 0.0, %v1399
        %v1401 = vpop.f32.mrb[0].mxu0
        %v1402 = vadd.f32 0.0, %v1401
        %1403 = vmatprep.mubr.f32.mxu0 %v895
        %1404 = vmatmul.mubr.f32.gmra.mrb[0].mxu0 %v894
        %v1405 = vpop.f32.mrb[0].mxu0
        %v1406 = vadd.f32 0.0, %v1405
        %v1407 = vpop.f32.mrb[0].mxu0
        %v1408 = vadd.f32 0.0, %v1407
        %1409 = vdwg.mxu0
        %v1410 = vadd.f32 %v896, %v1155
        %v1411 = vadd.f32 %v897, %v1157
        %v1412 = vadd.f32 %v898, %v1316
        %v1413 = vadd.f32 %v899, %v1318
        %v1414 = vadd.f32 %v900, %v1161
        %v1415 = vadd.f32 %v901, %v1163
        %v1416 = vadd.f32 %v902, %v1322
        %v1417 = vadd.f32 %v903, %v1324
        %v1418 = vadd.f32 %v904, %v1167
        %v1419 = vadd.f32 %v905, %v1169
        %v1420 = vadd.f32 %v906, %v1328
        %v1421 = vadd.f32 %v907, %v1330
        %v1422 = vadd.f32 %v908, %v1173
        %v1423 = vadd.f32 %v909, %v1175
        %v1424 = vadd.f32 %v910, %v1334
        %v1425 = vadd.f32 %v911, %v1336
        %v1426 = vadd.f32 %v912, %v1179
        %v1427 = vadd.f32 %v913, %v1181
        %v1428 = vadd.f32 %v914, %v1340
        %v1429 = vadd.f32 %v915, %v1342
        %v1430 = vadd.f32 %v916, %v1185
        %v1431 = vadd.f32 %v917, %v1187
        %v1432 = vadd.f32 %v918, %v1346
        %v1433 = vadd.f32 %v919, %v1348
        %v1434 = vadd.f32 %v920, %v1191
        %v1435 = vadd.f32 %v921, %v1193
        %v1436 = vadd.f32 %v922, %v1352
        %v1437 = vadd.f32 %v923, %v1354
        %v1438 = vadd.f32 %v924, %v1197
        %v1439 = vadd.f32 %v925, %v1199
        %v1440 = vadd.f32 %v926, %v1358
        %v1441 = vadd.f32 %v927, %v1360
        %v1442 = vadd.f32 %v928, %v1203
        %v1443 = vadd.f32 %v929, %v1205
        %v1444 = vadd.f32 %v930, %v1364
        %v1445 = vadd.f32 %v931, %v1366
        %v1446 = vadd.f32 %v932, %v1209
        %v1447 = vadd.f32 %v933, %v1211
        %v1448 = vadd.f32 %v934, %v1370
        %v1449 = vadd.f32 %v935, %v1372
        %v1450 = vadd.f32 %v936, %v1215
        %v1451 = vadd.f32 %v937, %v1217
        %v1452 = vadd.f32 %v938, %v1376
        %v1453 = vadd.f32 %v939, %v1378
        %v1454 = vadd.f32 %v940, %v1221
        %v1455 = vadd.f32 %v941, %v1223
        %v1456 = vadd.f32 %v942, %v1382
        %v1457 = vadd.f32 %v943, %v1384
        %v1458 = vadd.f32 %v944, %v1227
        %v1459 = vadd.f32 %v945, %v1229
        %v1460 = vadd.f32 %v946, %v1388
        %v1461 = vadd.f32 %v947, %v1390
        %v1462 = vadd.f32 %v948, %v1233
        %v1463 = vadd.f32 %v949, %v1235
        %v1464 = vadd.f32 %v950, %v1394
        %v1465 = vadd.f32 %v951, %v1396
        %v1466 = vadd.f32 %v952, %v1239
        %v1467 = vadd.f32 %v953, %v1241
        %v1468 = vadd.f32 %v954, %v1400
        %v1469 = vadd.f32 %v955, %v1402
        %v1470 = vadd.f32 %v956, %v1245
        %v1471 = vadd.f32 %v957, %v1247
        %v1472 = vadd.f32 %v958, %v1406
        %v1473 = vadd.f32 %v959, %v1408
        %1474 = vst [vmem:[#allocation2] sm:$0xff] %v1410
        %1475 = vst [vmem:[#allocation2 + $0x8] sm:$0xff] %v1411
        %1476 = vst [vmem:[#allocation2 + $0x10] sm:$0xff] %v1412
        %1477 = vst [vmem:[#allocation2 + $0x18] sm:$0xff] %v1413
        %1478 = vst [vmem:[#allocation2 + $0x20] sm:$0xff] %v1414
        %1479 = vst [vmem:[#allocation2 + $0x28] sm:$0xff] %v1415
        %1480 = vst [vmem:[#allocation2 + $0x30] sm:$0xff] %v1416
        %1481 = vst [vmem:[#allocation2 + $0x38] sm:$0xff] %v1417
        %1482 = vst [vmem:[#allocation2 + $0x40] sm:$0xff] %v1418
        %1483 = vst [vmem:[#allocation2 + $0x48] sm:$0xff] %v1419
        %1484 = vst [vmem:[#allocation2 + $0x50] sm:$0xff] %v1420
        %1485 = vst [vmem:[#allocation2 + $0x58] sm:$0xff] %v1421
        %1486 = vst [vmem:[#allocation2 + $0x60] sm:$0xff] %v1422
        %1487 = vst [vmem:[#allocation2 + $0x68] sm:$0xff] %v1423
        %1488 = vst [vmem:[#allocation2 + $0x70] sm:$0xff] %v1424
        %1489 = vst [vmem:[#allocation2 + $0x78] sm:$0xff] %v1425
        %1490 = vst [vmem:[#allocation2 + $0x80] sm:$0xff] %v1426
        %1491 = vst [vmem:[#allocation2 + $0x88] sm:$0xff] %v1427
        %1492 = vst [vmem:[#allocation2 + $0x90] sm:$0xff] %v1428
        %1493 = vst [vmem:[#allocation2 + $0x98] sm:$0xff] %v1429
        %1494 = vst [vmem:[#allocation2 + $0xa0] sm:$0xff] %v1430
        %1495 = vst [vmem:[#allocation2 + $0xa8] sm:$0xff] %v1431
        %1496 = vst [vmem:[#allocation2 + $0xb0] sm:$0xff] %v1432
        %1497 = vst [vmem:[#allocation2 + $0xb8] sm:$0xff] %v1433
        %1498 = vst [vmem:[#allocation2 + $0xc0] sm:$0xff] %v1434
        %1499 = vst [vmem:[#allocation2 + $0xc8] sm:$0xff] %v1435
        %1500 = vst [vmem:[#allocation2 + $0xd0] sm:$0xff] %v1436
        %1501 = vst [vmem:[#allocation2 + $0xd8] sm:$0xff] %v1437
        %1502 = vst [vmem:[#allocation2 + $0xe0] sm:$0xff] %v1438
        %1503 = vst [vmem:[#allocation2 + $0xe8] sm:$0xff] %v1439
        %1504 = vst [vmem:[#allocation2 + $0xf0] sm:$0xff] %v1440
        %1505 = vst [vmem:[#allocation2 + $0xf8] sm:$0xff] %v1441
        %1506 = vst [vmem:[#allocation2 + $0x100] sm:$0xff] %v1442
        %1507 = vst [vmem:[#allocation2 + $0x108] sm:$0xff] %v1443
        %1508 = vst [vmem:[#allocation2 + $0x110] sm:$0xff] %v1444
        %1509 = vst [vmem:[#allocation2 + $0x118] sm:$0xff] %v1445
        %1510 = vst [vmem:[#allocation2 + $0x120] sm:$0xff] %v1446
        %1511 = vst [vmem:[#allocation2 + $0x128] sm:$0xff] %v1447
        %1512 = vst [vmem:[#allocation2 + $0x130] sm:$0xff] %v1448
        %1513 = vst [vmem:[#allocation2 + $0x138] sm:$0xff] %v1449
        %1514 = vst [vmem:[#allocation2 + $0x140] sm:$0xff] %v1450
        %1515 = vst [vmem:[#allocation2 + $0x148] sm:$0xff] %v1451
        %1516 = vst [vmem:[#allocation2 + $0x150] sm:$0xff] %v1452
        %1517 = vst [vmem:[#allocation2 + $0x158] sm:$0xff] %v1453
        %1518 = vst [vmem:[#allocation2 + $0x160] sm:$0xff] %v1454
        %1519 = vst [vmem:[#allocation2 + $0x168] sm:$0xff] %v1455
        %1520 = vst [vmem:[#allocation2 + $0x170] sm:$0xff] %v1456
        %1521 = vst [vmem:[#allocation2 + $0x178] sm:$0xff] %v1457
        %1522 = vst [vmem:[#allocation2 + $0x180] sm:$0xff] %v1458
        %1523 = vst [vmem:[#allocation2 + $0x188] sm:$0xff] %v1459
        %1524 = vst [vmem:[#allocation2 + $0x190] sm:$0xff] %v1460
        %1525 = vst [vmem:[#allocation2 + $0x198] sm:$0xff] %v1461
        %1526 = vst [vmem:[#allocation2 + $0x1a0] sm:$0xff] %v1462
        %1527 = vst [vmem:[#allocation2 + $0x1a8] sm:$0xff] %v1463
        %1528 = vst [vmem:[#allocation2 + $0x1b0] sm:$0xff] %v1464
        %1529 = vst [vmem:[#allocation2 + $0x1b8] sm:$0xff] %v1465
        %1530 = vst [vmem:[#allocation2 + $0x1c0] sm:$0xff] %v1466
        %1531 = vst [vmem:[#allocation2 + $0x1c8] sm:$0xff] %v1467
        %1532 = vst [vmem:[#allocation2 + $0x1d0] sm:$0xff] %v1468
        %1533 = vst [vmem:[#allocation2 + $0x1d8] sm:$0xff] %v1469
        %1534 = vst [vmem:[#allocation2 + $0x1e0] sm:$0xff] %v1470
        %1535 = vst [vmem:[#allocation2 + $0x1e8] sm:$0xff] %v1471
        %1536 = vst [vmem:[#allocation2 + $0x1f0] sm:$0xff] %v1472
        %1537 = vst [vmem:[#allocation2 + $0x1f8] sm:$0xff] %v1473
        %p1538 = scmp.eq.s32.totalorder %s32, 1
        // Predicated region
        $region65: #{tpu_custom_call.1} parent=47 // pred_check
          %p1539 = pneg %p1538
        $region66: #{tpu_custom_call.1} parent=47 // pred_check_branch
          %1541 = sbr.rel (%p1539) target = $region68
        $region67: #{tpu_custom_call.1} parent=47 // pred_region
          %v1542 = vld [vmem:[#allocation2] sm:$0xff]
          %v1543 = vld [vmem:[#allocation2 + $0x8] sm:$0xff]
          %v1544 = vld [vmem:[#allocation2 + $0x10] sm:$0xff]
          %v1545 = vld [vmem:[#allocation2 + $0x18] sm:$0xff]
          %v1546 = vld [vmem:[#allocation2 + $0x20] sm:$0xff]
          %v1547 = vld [vmem:[#allocation2 + $0x28] sm:$0xff]
          %v1548 = vld [vmem:[#allocation2 + $0x30] sm:$0xff]
          %v1549 = vld [vmem:[#allocation2 + $0x38] sm:$0xff]
          %v1550 = vld [vmem:[#allocation2 + $0x40] sm:$0xff]
          %v1551 = vld [vmem:[#allocation2 + $0x48] sm:$0xff]
          %v1552 = vld [vmem:[#allocation2 + $0x50] sm:$0xff]
          %v1553 = vld [vmem:[#allocation2 + $0x58] sm:$0xff]
          %v1554 = vld [vmem:[#allocation2 + $0x60] sm:$0xff]
          %v1555 = vld [vmem:[#allocation2 + $0x68] sm:$0xff]
          %v1556 = vld [vmem:[#allocation2 + $0x70] sm:$0xff]
          %v1557 = vld [vmem:[#allocation2 + $0x78] sm:$0xff]
          %v1558 = vld [vmem:[#allocation2 + $0x80] sm:$0xff]
          %v1559 = vld [vmem:[#allocation2 + $0x88] sm:$0xff]
          %v1560 = vld [vmem:[#allocation2 + $0x90] sm:$0xff]
          %v1561 = vld [vmem:[#allocation2 + $0x98] sm:$0xff]
          %v1562 = vld [vmem:[#allocation2 + $0xa0] sm:$0xff]
          %v1563 = vld [vmem:[#allocation2 + $0xa8] sm:$0xff]
          %v1564 = vld [vmem:[#allocation2 + $0xb0] sm:$0xff]
          %v1565 = vld [vmem:[#allocation2 + $0xb8] sm:$0xff]
          %v1566 = vld [vmem:[#allocation2 + $0xc0] sm:$0xff]
          %v1567 = vld [vmem:[#allocation2 + $0xc8] sm:$0xff]
          %v1568 = vld [vmem:[#allocation2 + $0xd0] sm:$0xff]
          %v1569 = vld [vmem:[#allocation2 + $0xd8] sm:$0xff]
          %v1570 = vld [vmem:[#allocation2 + $0xe0] sm:$0xff]
          %v1571 = vld [vmem:[#allocation2 + $0xe8] sm:$0xff]
          %v1572 = vld [vmem:[#allocation2 + $0xf0] sm:$0xff]
          %v1573 = vld [vmem:[#allocation2 + $0xf8] sm:$0xff]
          %v1574 = vld [vmem:[#allocation2 + $0x100] sm:$0xff]
          %v1575 = vld [vmem:[#allocation2 + $0x108] sm:$0xff]
          %v1576 = vld [vmem:[#allocation2 + $0x110] sm:$0xff]
          %v1577 = vld [vmem:[#allocation2 + $0x118] sm:$0xff]
          %v1578 = vld [vmem:[#allocation2 + $0x120] sm:$0xff]
          %v1579 = vld [vmem:[#allocation2 + $0x128] sm:$0xff]
          %v1580 = vld [vmem:[#allocation2 + $0x130] sm:$0xff]
          %v1581 = vld [vmem:[#allocation2 + $0x138] sm:$0xff]
          %v1582 = vld [vmem:[#allocation2 + $0x140] sm:$0xff]
          %v1583 = vld [vmem:[#allocation2 + $0x148] sm:$0xff]
          %v1584 = vld [vmem:[#allocation2 + $0x150] sm:$0xff]
          %v1585 = vld [vmem:[#allocation2 + $0x158] sm:$0xff]
          %v1586 = vld [vmem:[#allocation2 + $0x160] sm:$0xff]
          %v1587 = vld [vmem:[#allocation2 + $0x168] sm:$0xff]
          %v1588 = vld [vmem:[#allocation2 + $0x170] sm:$0xff]
          %v1589 = vld [vmem:[#allocation2 + $0x178] sm:$0xff]
          %v1590 = vld [vmem:[#allocation2 + $0x180] sm:$0xff]
          %v1591 = vld [vmem:[#allocation2 + $0x188] sm:$0xff]
          %v1592 = vld [vmem:[#allocation2 + $0x190] sm:$0xff]
          %v1593 = vld [vmem:[#allocation2 + $0x198] sm:$0xff]
          %v1594 = vld [vmem:[#allocation2 + $0x1a0] sm:$0xff]
          %v1595 = vld [vmem:[#allocation2 + $0x1a8] sm:$0xff]
          %v1596 = vld [vmem:[#allocation2 + $0x1b0] sm:$0xff]
          %v1597 = vld [vmem:[#allocation2 + $0x1b8] sm:$0xff]
          %v1598 = vld [vmem:[#allocation2 + $0x1c0] sm:$0xff]
          %v1599 = vld [vmem:[#allocation2 + $0x1c8] sm:$0xff]
          %v1600 = vld [vmem:[#allocation2 + $0x1d0] sm:$0xff]
          %v1601 = vld [vmem:[#allocation2 + $0x1d8] sm:$0xff]
          %v1602 = vld [vmem:[#allocation2 + $0x1e0] sm:$0xff]
          %v1603 = vld [vmem:[#allocation2 + $0x1e8] sm:$0xff]
          %v1604 = vld [vmem:[#allocation2 + $0x1f0] sm:$0xff]
          %v1605 = vld [vmem:[#allocation2 + $0x1f8] sm:$0xff]
          %v1606 = vld [vmem:[%s4] sm:$0xf]
          %v1608 = vlaneseq
          %v1609 = vshrl.u32 %v1608, 7
          %v1610 = vsub.s32 0, %v1609
          %v1611 = vrot.slane %v1606, %v1610
          %v1612 = vlaneseq
          %v1613 = vshrl.u32 %v1612, 7
          %v1614 = vsub.s32 1, %v1613
          %v1615 = vrot.slane %v1606, %v1614
          %v1616 = vlaneseq
          %v1617 = vshrl.u32 %v1616, 7
          %v1618 = vsub.s32 2, %v1617
          %v1619 = vrot.slane %v1606, %v1618
          %v1620 = vlaneseq
          %v1621 = vshrl.u32 %v1620, 7
          %v1622 = vsub.s32 3, %v1621
          %v1623 = vrot.slane %v1606, %v1622
          %v1628 = vadd.f32 %v1542, %v1611
          %v1629 = vadd.f32 %v1543, %v1615
          %v1630 = vadd.f32 %v1544, %v1619
          %v1631 = vadd.f32 %v1545, %v1623
          %v1632 = vadd.f32 %v1546, %v1611
          %v1633 = vadd.f32 %v1547, %v1615
          %v1634 = vadd.f32 %v1548, %v1619
          %v1635 = vadd.f32 %v1549, %v1623
          %v1636 = vadd.f32 %v1550, %v1611
          %v1637 = vadd.f32 %v1551, %v1615
          %v1638 = vadd.f32 %v1552, %v1619
          %v1639 = vadd.f32 %v1553, %v1623
          %v1640 = vadd.f32 %v1554, %v1611
          %v1641 = vadd.f32 %v1555, %v1615
          %v1642 = vadd.f32 %v1556, %v1619
          %v1643 = vadd.f32 %v1557, %v1623
          %v1644 = vadd.f32 %v1558, %v1611
          %v1645 = vadd.f32 %v1559, %v1615
          %v1646 = vadd.f32 %v1560, %v1619
          %v1647 = vadd.f32 %v1561, %v1623
          %v1648 = vadd.f32 %v1562, %v1611
          %v1649 = vadd.f32 %v1563, %v1615
          %v1650 = vadd.f32 %v1564, %v1619
          %v1651 = vadd.f32 %v1565, %v1623
          %v1652 = vadd.f32 %v1566, %v1611
          %v1653 = vadd.f32 %v1567, %v1615
          %v1654 = vadd.f32 %v1568, %v1619
          %v1655 = vadd.f32 %v1569, %v1623
          %v1656 = vadd.f32 %v1570, %v1611
          %v1657 = vadd.f32 %v1571, %v1615
          %v1658 = vadd.f32 %v1572, %v1619
          %v1659 = vadd.f32 %v1573, %v1623
          %v1660 = vadd.f32 %v1574, %v1611
          %v1661 = vadd.f32 %v1575, %v1615
          %v1662 = vadd.f32 %v1576, %v1619
          %v1663 = vadd.f32 %v1577, %v1623
          %v1664 = vadd.f32 %v1578, %v1611
          %v1665 = vadd.f32 %v1579, %v1615
          %v1666 = vadd.f32 %v1580, %v1619
          %v1667 = vadd.f32 %v1581, %v1623
          %v1668 = vadd.f32 %v1582, %v1611
          %v1669 = vadd.f32 %v1583, %v1615
          %v1670 = vadd.f32 %v1584, %v1619
          %v1671 = vadd.f32 %v1585, %v1623
          %v1672 = vadd.f32 %v1586, %v1611
          %v1673 = vadd.f32 %v1587, %v1615
          %v1674 = vadd.f32 %v1588, %v1619
          %v1675 = vadd.f32 %v1589, %v1623
          %v1676 = vadd.f32 %v1590, %v1611
          %v1677 = vadd.f32 %v1591, %v1615
          %v1678 = vadd.f32 %v1592, %v1619
          %v1679 = vadd.f32 %v1593, %v1623
          %v1680 = vadd.f32 %v1594, %v1611
          %v1681 = vadd.f32 %v1595, %v1615
          %v1682 = vadd.f32 %v1596, %v1619
          %v1683 = vadd.f32 %v1597, %v1623
          %v1684 = vadd.f32 %v1598, %v1611
          %v1685 = vadd.f32 %v1599, %v1615
          %v1686 = vadd.f32 %v1600, %v1619
          %v1687 = vadd.f32 %v1601, %v1623
          %v1688 = vadd.f32 %v1602, %v1611
          %v1689 = vadd.f32 %v1603, %v1615
          %v1690 = vadd.f32 %v1604, %v1619
          %v1691 = vadd.f32 %v1605, %v1623
          %v1692 = vld [vmem:[#allocation3] sm:$0xff]
          %v1693 = vld [vmem:[#allocation3 + $0x8] sm:$0xff]
          %v1694 = vld [vmem:[#allocation3 + $0x10] sm:$0xff]
          %v1695 = vld [vmem:[#allocation3 + $0x18] sm:$0xff]
          %v1696 = vld [vmem:[#allocation3 + $0x20] sm:$0xff]
          %v1697 = vld [vmem:[#allocation3 + $0x28] sm:$0xff]
          %v1698 = vld [vmem:[#allocation3 + $0x30] sm:$0xff]
          %v1699 = vld [vmem:[#allocation3 + $0x38] sm:$0xff]
          %v1700 = vld [vmem:[#allocation3 + $0x40] sm:$0xff]
          %v1701 = vld [vmem:[#allocation3 + $0x48] sm:$0xff]
          %v1702 = vld [vmem:[#allocation3 + $0x50] sm:$0xff]
          %v1703 = vld [vmem:[#allocation3 + $0x58] sm:$0xff]
          %v1704 = vld [vmem:[#allocation3 + $0x60] sm:$0xff]
          %v1705 = vld [vmem:[#allocation3 + $0x68] sm:$0xff]
          %v1706 = vld [vmem:[#allocation3 + $0x70] sm:$0xff]
          %v1707 = vld [vmem:[#allocation3 + $0x78] sm:$0xff]
          %v1708 = vld [vmem:[#allocation3 + $0x80] sm:$0xff]
          %v1709 = vld [vmem:[#allocation3 + $0x88] sm:$0xff]
          %v1710 = vld [vmem:[#allocation3 + $0x90] sm:$0xff]
          %v1711 = vld [vmem:[#allocation3 + $0x98] sm:$0xff]
          %v1712 = vld [vmem:[#allocation3 + $0xa0] sm:$0xff]
          %v1713 = vld [vmem:[#allocation3 + $0xa8] sm:$0xff]
          %v1714 = vld [vmem:[#allocation3 + $0xb0] sm:$0xff]
          %v1715 = vld [vmem:[#allocation3 + $0xb8] sm:$0xff]
          %v1716 = vld [vmem:[#allocation3 + $0xc0] sm:$0xff]
          %v1717 = vld [vmem:[#allocation3 + $0xc8] sm:$0xff]
          %v1718 = vld [vmem:[#allocation3 + $0xd0] sm:$0xff]
          %v1719 = vld [vmem:[#allocation3 + $0xd8] sm:$0xff]
          %v1720 = vld [vmem:[#allocation3 + $0xe0] sm:$0xff]
          %v1721 = vld [vmem:[#allocation3 + $0xe8] sm:$0xff]
          %v1722 = vld [vmem:[#allocation3 + $0xf0] sm:$0xff]
          %v1723 = vld [vmem:[#allocation3 + $0xf8] sm:$0xff]
          %v1724 = vld [vmem:[#allocation3 + $0x100] sm:$0xff]
          %v1725 = vld [vmem:[#allocation3 + $0x108] sm:$0xff]
          %v1726 = vld [vmem:[#allocation3 + $0x110] sm:$0xff]
          %v1727 = vld [vmem:[#allocation3 + $0x118] sm:$0xff]
          %v1728 = vld [vmem:[#allocation3 + $0x120] sm:$0xff]
          %v1729 = vld [vmem:[#allocation3 + $0x128] sm:$0xff]
          %v1730 = vld [vmem:[#allocation3 + $0x130] sm:$0xff]
          %v1731 = vld [vmem:[#allocation3 + $0x138] sm:$0xff]
          %v1732 = vld [vmem:[#allocation3 + $0x140] sm:$0xff]
          %v1733 = vld [vmem:[#allocation3 + $0x148] sm:$0xff]
          %v1734 = vld [vmem:[#allocation3 + $0x150] sm:$0xff]
          %v1735 = vld [vmem:[#allocation3 + $0x158] sm:$0xff]
          %v1736 = vld [vmem:[#allocation3 + $0x160] sm:$0xff]
          %v1737 = vld [vmem:[#allocation3 + $0x168] sm:$0xff]
          %v1738 = vld [vmem:[#allocation3 + $0x170] sm:$0xff]
          %v1739 = vld [vmem:[#allocation3 + $0x178] sm:$0xff]
          %v1740 = vld [vmem:[#allocation3 + $0x180] sm:$0xff]
          %v1741 = vld [vmem:[#allocation3 + $0x188] sm:$0xff]
          %v1742 = vld [vmem:[#allocation3 + $0x190] sm:$0xff]
          %v1743 = vld [vmem:[#allocation3 + $0x198] sm:$0xff]
          %v1744 = vld [vmem:[#allocation3 + $0x1a0] sm:$0xff]
          %v1745 = vld [vmem:[#allocation3 + $0x1a8] sm:$0xff]
          %v1746 = vld [vmem:[#allocation3 + $0x1b0] sm:$0xff]
          %v1747 = vld [vmem:[#allocation3 + $0x1b8] sm:$0xff]
          %v1748 = vld [vmem:[#allocation3 + $0x1c0] sm:$0xff]
          %v1749 = vld [vmem:[#allocation3 + $0x1c8] sm:$0xff]
          %v1750 = vld [vmem:[#allocation3 + $0x1d0] sm:$0xff]
          %v1751 = vld [vmem:[#allocation3 + $0x1d8] sm:$0xff]
          %v1752 = vld [vmem:[#allocation3 + $0x1e0] sm:$0xff]
          %v1753 = vld [vmem:[#allocation3 + $0x1e8] sm:$0xff]
          %v1754 = vld [vmem:[#allocation3 + $0x1f0] sm:$0xff]
          %v1755 = vld [vmem:[#allocation3 + $0x1f8] sm:$0xff]
          %v1756 = vadd.f32 %v1628, %v1692
          %v1757 = vadd.f32 %v1629, %v1693
          %v1758 = vadd.f32 %v1630, %v1694
          %v1759 = vadd.f32 %v1631, %v1695
          %v1760 = vadd.f32 %v1632, %v1696
          %v1761 = vadd.f32 %v1633, %v1697
          %v1762 = vadd.f32 %v1634, %v1698
          %v1763 = vadd.f32 %v1635, %v1699
          %v1764 = vadd.f32 %v1636, %v1700
          %v1765 = vadd.f32 %v1637, %v1701
          %v1766 = vadd.f32 %v1638, %v1702
          %v1767 = vadd.f32 %v1639, %v1703
          %v1768 = vadd.f32 %v1640, %v1704
          %v1769 = vadd.f32 %v1641, %v1705
          %v1770 = vadd.f32 %v1642, %v1706
          %v1771 = vadd.f32 %v1643, %v1707
          %v1772 = vadd.f32 %v1644, %v1708
          %v1773 = vadd.f32 %v1645, %v1709
          %v1774 = vadd.f32 %v1646, %v1710
          %v1775 = vadd.f32 %v1647, %v1711
          %v1776 = vadd.f32 %v1648, %v1712
          %v1777 = vadd.f32 %v1649, %v1713
          %v1778 = vadd.f32 %v1650, %v1714
          %v1779 = vadd.f32 %v1651, %v1715
          %v1780 = vadd.f32 %v1652, %v1716
          %v1781 = vadd.f32 %v1653, %v1717
          %v1782 = vadd.f32 %v1654, %v1718
          %v1783 = vadd.f32 %v1655, %v1719
          %v1784 = vadd.f32 %v1656, %v1720
          %v1785 = vadd.f32 %v1657, %v1721
          %v1786 = vadd.f32 %v1658, %v1722
          %v1787 = vadd.f32 %v1659, %v1723
          %v1788 = vadd.f32 %v1660, %v1724
          %v1789 = vadd.f32 %v1661, %v1725
          %v1790 = vadd.f32 %v1662, %v1726
          %v1791 = vadd.f32 %v1663, %v1727
          %v1792 = vadd.f32 %v1664, %v1728
          %v1793 = vadd.f32 %v1665, %v1729
          %v1794 = vadd.f32 %v1666, %v1730
          %v1795 = vadd.f32 %v1667, %v1731
          %v1796 = vadd.f32 %v1668, %v1732
          %v1797 = vadd.f32 %v1669, %v1733
          %v1798 = vadd.f32 %v1670, %v1734
          %v1799 = vadd.f32 %v1671, %v1735
          %v1800 = vadd.f32 %v1672, %v1736
          %v1801 = vadd.f32 %v1673, %v1737
          %v1802 = vadd.f32 %v1674, %v1738
          %v1803 = vadd.f32 %v1675, %v1739
          %v1804 = vadd.f32 %v1676, %v1740
          %v1805 = vadd.f32 %v1677, %v1741
          %v1806 = vadd.f32 %v1678, %v1742
          %v1807 = vadd.f32 %v1679, %v1743
          %v1808 = vadd.f32 %v1680, %v1744
          %v1809 = vadd.f32 %v1681, %v1745
          %v1810 = vadd.f32 %v1682, %v1746
          %v1811 = vadd.f32 %v1683, %v1747
          %v1812 = vadd.f32 %v1684, %v1748
          %v1813 = vadd.f32 %v1685, %v1749
          %v1814 = vadd.f32 %v1686, %v1750
          %v1815 = vadd.f32 %v1687, %v1751
          %v1816 = vadd.f32 %v1688, %v1752
          %v1817 = vadd.f32 %v1689, %v1753
          %v1818 = vadd.f32 %v1690, %v1754
          %v1819 = vadd.f32 %v1691, %v1755
          %v1820 = vadd.f32 %v1756, %v1757
          %v1821 = vadd.f32 %v1820, %v1758
          %v1822 = vadd.f32 %v1821, %v1759
          %1823 = vadd.xlane.f32.xlu0 %v1822
          %v1824 = vpop.xlane.xlu0 %1823
          %v1825 = vadd.f32 %v1760, %v1761
          %v1826 = vadd.f32 %v1825, %v1762
          %v1827 = vadd.f32 %v1826, %v1763
          %1828 = vadd.xlane.f32.xlu0 %v1827
          %v1829 = vpop.xlane.xlu0 %1828
          %v1830 = vadd.f32 %v1764, %v1765
          %v1831 = vadd.f32 %v1830, %v1766
          %v1832 = vadd.f32 %v1831, %v1767
          %1833 = vadd.xlane.f32.xlu0 %v1832
          %v1834 = vpop.xlane.xlu0 %1833
          %v1835 = vadd.f32 %v1768, %v1769
          %v1836 = vadd.f32 %v1835, %v1770
          %v1837 = vadd.f32 %v1836, %v1771
          %1838 = vadd.xlane.f32.xlu0 %v1837
          %v1839 = vpop.xlane.xlu0 %1838
          %v1840 = vadd.f32 %v1772, %v1773
          %v1841 = vadd.f32 %v1840, %v1774
          %v1842 = vadd.f32 %v1841, %v1775
          %1843 = vadd.xlane.f32.xlu0 %v1842
          %v1844 = vpop.xlane.xlu0 %1843
          %v1845 = vadd.f32 %v1776, %v1777
          %v1846 = vadd.f32 %v1845, %v1778
          %v1847 = vadd.f32 %v1846, %v1779
          %1848 = vadd.xlane.f32.xlu0 %v1847
          %v1849 = vpop.xlane.xlu0 %1848
          %v1850 = vadd.f32 %v1780, %v1781
          %v1851 = vadd.f32 %v1850, %v1782
          %v1852 = vadd.f32 %v1851, %v1783
          %1853 = vadd.xlane.f32.xlu0 %v1852
          %v1854 = vpop.xlane.xlu0 %1853
          %v1855 = vadd.f32 %v1784, %v1785
          %v1856 = vadd.f32 %v1855, %v1786
          %v1857 = vadd.f32 %v1856, %v1787
          %1858 = vadd.xlane.f32.xlu0 %v1857
          %v1859 = vpop.xlane.xlu0 %1858
          %v1860 = vadd.f32 %v1788, %v1789
          %v1861 = vadd.f32 %v1860, %v1790
          %v1862 = vadd.f32 %v1861, %v1791
          %1863 = vadd.xlane.f32.xlu0 %v1862
          %v1864 = vpop.xlane.xlu0 %1863
          %v1865 = vadd.f32 %v1792, %v1793
          %v1866 = vadd.f32 %v1865, %v1794
          %v1867 = vadd.f32 %v1866, %v1795
          %1868 = vadd.xlane.f32.xlu0 %v1867
          %v1869 = vpop.xlane.xlu0 %1868
          %v1870 = vadd.f32 %v1796, %v1797
          %v1871 = vadd.f32 %v1870, %v1798
          %v1872 = vadd.f32 %v1871, %v1799
          %1873 = vadd.xlane.f32.xlu0 %v1872
          %v1874 = vpop.xlane.xlu0 %1873
          %v1875 = vadd.f32 %v1800, %v1801
          %v1876 = vadd.f32 %v1875, %v1802
          %v1877 = vadd.f32 %v1876, %v1803
          %1878 = vadd.xlane.f32.xlu0 %v1877
          %v1879 = vpop.xlane.xlu0 %1878
          %v1880 = vadd.f32 %v1804, %v1805
          %v1881 = vadd.f32 %v1880, %v1806
          %v1882 = vadd.f32 %v1881, %v1807
          %1883 = vadd.xlane.f32.xlu0 %v1882
          %v1884 = vpop.xlane.xlu0 %1883
          %v1885 = vadd.f32 %v1808, %v1809
          %v1886 = vadd.f32 %v1885, %v1810
          %v1887 = vadd.f32 %v1886, %v1811
          %1888 = vadd.xlane.f32.xlu0 %v1887
          %v1889 = vpop.xlane.xlu0 %1888
          %v1890 = vadd.f32 %v1812, %v1813
          %v1891 = vadd.f32 %v1890, %v1814
          %v1892 = vadd.f32 %v1891, %v1815
          %1893 = vadd.xlane.f32.xlu0 %v1892
          %v1894 = vpop.xlane.xlu0 %1893
          %v1895 = vadd.f32 %v1816, %v1817
          %v1896 = vadd.f32 %v1895, %v1818
          %v1897 = vadd.f32 %v1896, %v1819
          %1898 = vadd.xlane.f32.xlu0 %v1897
          %v1899 = vpop.xlane.xlu0 %1898
          %v1900 = vrcp.pop 512.0
          %v1901 = vmul.f32 %v1824, %v1900
          %v1902 = vmul.f32 %v1829, %v1900
          %v1903 = vmul.f32 %v1834, %v1900
          %v1904 = vmul.f32 %v1839, %v1900
          %v1905 = vmul.f32 %v1844, %v1900
          %v1906 = vmul.f32 %v1849, %v1900
          %v1907 = vmul.f32 %v1854, %v1900
          %v1908 = vmul.f32 %v1859, %v1900
          %v1909 = vmul.f32 %v1864, %v1900
          %v1910 = vmul.f32 %v1869, %v1900
          %v1911 = vmul.f32 %v1874, %v1900
          %v1912 = vmul.f32 %v1879, %v1900
          %v1913 = vmul.f32 %v1884, %v1900
          %v1914 = vmul.f32 %v1889, %v1900
          %v1915 = vmul.f32 %v1894, %v1900
          %v1916 = vmul.f32 %v1899, %v1900
          %v1917 = vsub.f32 %v1756, %v1901
          %v1918 = vsub.f32 %v1757, %v1901
          %v1919 = vsub.f32 %v1758, %v1901
          %v1920 = vsub.f32 %v1759, %v1901
          %v1921 = vsub.f32 %v1760, %v1902
          %v1922 = vsub.f32 %v1761, %v1902
          %v1923 = vsub.f32 %v1762, %v1902
          %v1924 = vsub.f32 %v1763, %v1902
          %v1925 = vsub.f32 %v1764, %v1903
          %v1926 = vsub.f32 %v1765, %v1903
          %v1927 = vsub.f32 %v1766, %v1903
          %v1928 = vsub.f32 %v1767, %v1903
          %v1929 = vsub.f32 %v1768, %v1904
          %v1930 = vsub.f32 %v1769, %v1904
          %v1931 = vsub.f32 %v1770, %v1904
          %v1932 = vsub.f32 %v1771, %v1904
          %v1933 = vsub.f32 %v1772, %v1905
          %v1934 = vsub.f32 %v1773, %v1905
          %v1935 = vsub.f32 %v1774, %v1905
          %v1936 = vsub.f32 %v1775, %v1905
          %v1937 = vsub.f32 %v1776, %v1906
          %v1938 = vsub.f32 %v1777, %v1906
          %v1939 = vsub.f32 %v1778, %v1906
          %v1940 = vsub.f32 %v1779, %v1906
          %v1941 = vsub.f32 %v1780, %v1907
          %v1942 = vsub.f32 %v1781, %v1907
          %v1943 = vsub.f32 %v1782, %v1907
          %v1944 = vsub.f32 %v1783, %v1907
          %v1945 = vsub.f32 %v1784, %v1908
          %v1946 = vsub.f32 %v1785, %v1908
          %v1947 = vsub.f32 %v1786, %v1908
          %v1948 = vsub.f32 %v1787, %v1908
          %v1949 = vsub.f32 %v1788, %v1909
          %v1950 = vsub.f32 %v1789, %v1909
          %v1951 = vsub.f32 %v1790, %v1909
          %v1952 = vsub.f32 %v1791, %v1909
          %v1953 = vsub.f32 %v1792, %v1910
          %v1954 = vsub.f32 %v1793, %v1910
          %v1955 = vsub.f32 %v1794, %v1910
          %v1956 = vsub.f32 %v1795, %v1910
          %v1957 = vsub.f32 %v1796, %v1911
          %v1958 = vsub.f32 %v1797, %v1911
          %v1959 = vsub.f32 %v1798, %v1911
          %v1960 = vsub.f32 %v1799, %v1911
          %v1961 = vsub.f32 %v1800, %v1912
          %v1962 = vsub.f32 %v1801, %v1912
          %v1963 = vsub.f32 %v1802, %v1912
          %v1964 = vsub.f32 %v1803, %v1912
          %v1965 = vsub.f32 %v1804, %v1913
          %v1966 = vsub.f32 %v1805, %v1913
          %v1967 = vsub.f32 %v1806, %v1913
          %v1968 = vsub.f32 %v1807, %v1913
          %v1969 = vsub.f32 %v1808, %v1914
          %v1970 = vsub.f32 %v1809, %v1914
          %v1971 = vsub.f32 %v1810, %v1914
          %v1972 = vsub.f32 %v1811, %v1914
          %v1973 = vsub.f32 %v1812, %v1915
          %v1974 = vsub.f32 %v1813, %v1915
          %v1975 = vsub.f32 %v1814, %v1915
          %v1976 = vsub.f32 %v1815, %v1915
          %v1977 = vsub.f32 %v1816, %v1916
          %v1978 = vsub.f32 %v1817, %v1916
          %v1979 = vsub.f32 %v1818, %v1916
          %v1980 = vsub.f32 %v1819, %v1916
          %v1981 = vmul.f32 %v1917, %v1917
          %v1982 = vmul.f32 %v1918, %v1918
          %v1983 = vmul.f32 %v1919, %v1919
          %v1984 = vmul.f32 %v1920, %v1920
          %v1985 = vmul.f32 %v1921, %v1921
          %v1986 = vmul.f32 %v1922, %v1922
          %v1987 = vmul.f32 %v1923, %v1923
          %v1988 = vmul.f32 %v1924, %v1924
          %v1989 = vmul.f32 %v1925, %v1925
          %v1990 = vmul.f32 %v1926, %v1926
          %v1991 = vmul.f32 %v1927, %v1927
          %v1992 = vmul.f32 %v1928, %v1928
          %v1993 = vmul.f32 %v1929, %v1929
          %v1994 = vmul.f32 %v1930, %v1930
          %v1995 = vmul.f32 %v1931, %v1931
          %v1996 = vmul.f32 %v1932, %v1932
          %v1997 = vmul.f32 %v1933, %v1933
          %v1998 = vmul.f32 %v1934, %v1934
          %v1999 = vmul.f32 %v1935, %v1935
          %v2000 = vmul.f32 %v1936, %v1936
          %v2001 = vmul.f32 %v1937, %v1937
          %v2002 = vmul.f32 %v1938, %v1938
          %v2003 = vmul.f32 %v1939, %v1939
          %v2004 = vmul.f32 %v1940, %v1940
          %v2005 = vmul.f32 %v1941, %v1941
          %v2006 = vmul.f32 %v1942, %v1942
          %v2007 = vmul.f32 %v1943, %v1943
          %v2008 = vmul.f32 %v1944, %v1944
          %v2009 = vmul.f32 %v1945, %v1945
          %v2010 = vmul.f32 %v1946, %v1946
          %v2011 = vmul.f32 %v1947, %v1947
          %v2012 = vmul.f32 %v1948, %v1948
          %v2013 = vmul.f32 %v1949, %v1949
          %v2014 = vmul.f32 %v1950, %v1950
          %v2015 = vmul.f32 %v1951, %v1951
          %v2016 = vmul.f32 %v1952, %v1952
          %v2017 = vmul.f32 %v1953, %v1953
          %v2018 = vmul.f32 %v1954, %v1954
          %v2019 = vmul.f32 %v1955, %v1955
          %v2020 = vmul.f32 %v1956, %v1956
          %v2021 = vmul.f32 %v1957, %v1957
          %v2022 = vmul.f32 %v1958, %v1958
          %v2023 = vmul.f32 %v1959, %v1959
          %v2024 = vmul.f32 %v1960, %v1960
          %v2025 = vmul.f32 %v1961, %v1961
          %v2026 = vmul.f32 %v1962, %v1962
          %v2027 = vmul.f32 %v1963, %v1963
          %v2028 = vmul.f32 %v1964, %v1964
          %v2029 = vmul.f32 %v1965, %v1965
          %v2030 = vmul.f32 %v1966, %v1966
          %v2031 = vmul.f32 %v1967, %v1967
          %v2032 = vmul.f32 %v1968, %v1968
          %v2033 = vmul.f32 %v1969, %v1969
          %v2034 = vmul.f32 %v1970, %v1970
          %v2035 = vmul.f32 %v1971, %v1971
          %v2036 = vmul.f32 %v1972, %v1972
          %v2037 = vmul.f32 %v1973, %v1973
          %v2038 = vmul.f32 %v1974, %v1974
          %v2039 = vmul.f32 %v1975, %v1975
          %v2040 = vmul.f32 %v1976, %v1976
          %v2041 = vmul.f32 %v1977, %v1977
          %v2042 = vmul.f32 %v1978, %v1978
          %v2043 = vmul.f32 %v1979, %v1979
          %v2044 = vmul.f32 %v1980, %v1980
          %v2045 = vadd.f32 %v1981, %v1982
          %v2046 = vadd.f32 %v2045, %v1983
          %v2047 = vadd.f32 %v2046, %v1984
          %2048 = vadd.xlane.f32.xlu0 %v2047
          %v2049 = vpop.xlane.xlu0 %2048
          %v2050 = vadd.f32 %v1985, %v1986
          %v2051 = vadd.f32 %v2050, %v1987
          %v2052 = vadd.f32 %v2051, %v1988
          %2053 = vadd.xlane.f32.xlu0 %v2052
          %v2054 = vpop.xlane.xlu0 %2053
          %v2055 = vadd.f32 %v1989, %v1990
          %v2056 = vadd.f32 %v2055, %v1991
          %v2057 = vadd.f32 %v2056, %v1992
          %2058 = vadd.xlane.f32.xlu0 %v2057
          %v2059 = vpop.xlane.xlu0 %2058
          %v2060 = vadd.f32 %v1993, %v1994
          %v2061 = vadd.f32 %v2060, %v1995
          %v2062 = vadd.f32 %v2061, %v1996
          %2063 = vadd.xlane.f32.xlu0 %v2062
          %v2064 = vpop.xlane.xlu0 %2063
          %v2065 = vadd.f32 %v1997, %v1998
          %v2066 = vadd.f32 %v2065, %v1999
          %v2067 = vadd.f32 %v2066, %v2000
          %2068 = vadd.xlane.f32.xlu0 %v2067
          %v2069 = vpop.xlane.xlu0 %2068
          %v2070 = vadd.f32 %v2001, %v2002
          %v2071 = vadd.f32 %v2070, %v2003
          %v2072 = vadd.f32 %v2071, %v2004
          %2073 = vadd.xlane.f32.xlu0 %v2072
          %v2074 = vpop.xlane.xlu0 %2073
          %v2075 = vadd.f32 %v2005, %v2006
          %v2076 = vadd.f32 %v2075, %v2007
          %v2077 = vadd.f32 %v2076, %v2008
          %2078 = vadd.xlane.f32.xlu0 %v2077
          %v2079 = vpop.xlane.xlu0 %2078
          %v2080 = vadd.f32 %v2009, %v2010
          %v2081 = vadd.f32 %v2080, %v2011
          %v2082 = vadd.f32 %v2081, %v2012
          %2083 = vadd.xlane.f32.xlu0 %v2082
          %v2084 = vpop.xlane.xlu0 %2083
          %v2085 = vadd.f32 %v2013, %v2014
          %v2086 = vadd.f32 %v2085, %v2015
          %v2087 = vadd.f32 %v2086, %v2016
          %2088 = vadd.xlane.f32.xlu0 %v2087
          %v2089 = vpop.xlane.xlu0 %2088
          %v2090 = vadd.f32 %v2017, %v2018
          %v2091 = vadd.f32 %v2090, %v2019
          %v2092 = vadd.f32 %v2091, %v2020
          %2093 = vadd.xlane.f32.xlu0 %v2092
          %v2094 = vpop.xlane.xlu0 %2093
          %v2095 = vadd.f32 %v2021, %v2022
          %v2096 = vadd.f32 %v2095, %v2023
          %v2097 = vadd.f32 %v2096, %v2024
          %2098 = vadd.xlane.f32.xlu0 %v2097
          %v2099 = vpop.xlane.xlu0 %2098
          %v2100 = vadd.f32 %v2025, %v2026
          %v2101 = vadd.f32 %v2100, %v2027
          %v2102 = vadd.f32 %v2101, %v2028
          %2103 = vadd.xlane.f32.xlu0 %v2102
          %v2104 = vpop.xlane.xlu0 %2103
          %v2105 = vadd.f32 %v2029, %v2030
          %v2106 = vadd.f32 %v2105, %v2031
          %v2107 = vadd.f32 %v2106, %v2032
          %2108 = vadd.xlane.f32.xlu0 %v2107
          %v2109 = vpop.xlane.xlu0 %2108
          %v2110 = vadd.f32 %v2033, %v2034
          %v2111 = vadd.f32 %v2110, %v2035
          %v2112 = vadd.f32 %v2111, %v2036
          %2113 = vadd.xlane.f32.xlu0 %v2112
          %v2114 = vpop.xlane.xlu0 %2113
          %v2115 = vadd.f32 %v2037, %v2038
          %v2116 = vadd.f32 %v2115, %v2039
          %v2117 = vadd.f32 %v2116, %v2040
          %2118 = vadd.xlane.f32.xlu0 %v2117
          %v2119 = vpop.xlane.xlu0 %2118
          %v2120 = vadd.f32 %v2041, %v2042
          %v2121 = vadd.f32 %v2120, %v2043
          %v2122 = vadd.f32 %v2121, %v2044
          %2123 = vadd.xlane.f32.xlu0 %v2122
          %v2124 = vpop.xlane.xlu0 %2123
          %v2125 = vmul.f32 %v2049, %v1900
          %v2126 = vmul.f32 %v2054, %v1900
          %v2127 = vmul.f32 %v2059, %v1900
          %v2128 = vmul.f32 %v2064, %v1900
          %v2129 = vmul.f32 %v2069, %v1900
          %v2130 = vmul.f32 %v2074, %v1900
          %v2131 = vmul.f32 %v2079, %v1900
          %v2132 = vmul.f32 %v2084, %v1900
          %v2133 = vmul.f32 %v2089, %v1900
          %v2134 = vmul.f32 %v2094, %v1900
          %v2135 = vmul.f32 %v2099, %v1900
          %v2136 = vmul.f32 %v2104, %v1900
          %v2137 = vmul.f32 %v2109, %v1900
          %v2138 = vmul.f32 %v2114, %v1900
          %v2139 = vmul.f32 %v2119, %v1900
          %v2140 = vmul.f32 %v2124, %v1900
          %v2141 = vadd.f32 %v2125, 1e-05
          %v2142 = vadd.f32 %v2126, 1e-05
          %v2143 = vadd.f32 %v2127, 1e-05
          %v2144 = vadd.f32 %v2128, 1e-05
          %v2145 = vadd.f32 %v2129, 1e-05
          %v2146 = vadd.f32 %v2130, 1e-05
          %v2147 = vadd.f32 %v2131, 1e-05
          %v2148 = vadd.f32 %v2132, 1e-05
          %v2149 = vadd.f32 %v2133, 1e-05
          %v2150 = vadd.f32 %v2134, 1e-05
          %v2151 = vadd.f32 %v2135, 1e-05
          %v2152 = vadd.f32 %v2136, 1e-05
          %v2153 = vadd.f32 %v2137, 1e-05
          %v2154 = vadd.f32 %v2138, 1e-05
          %v2155 = vadd.f32 %v2139, 1e-05
          %v2156 = vadd.f32 %v2140, 1e-05
          %v2157 = vrsqrt.pop %v2141
          %v2158 = vrsqrt.pop %v2142
          %v2159 = vrsqrt.pop %v2143
          %v2160 = vrsqrt.pop %v2144
          %v2161 = vrsqrt.pop %v2145
          %v2162 = vrsqrt.pop %v2146
          %v2163 = vrsqrt.pop %v2147
          %v2164 = vrsqrt.pop %v2148
          %v2165 = vrsqrt.pop %v2149
          %v2166 = vrsqrt.pop %v2150
          %v2167 = vrsqrt.pop %v2151
          %v2168 = vrsqrt.pop %v2152
          %v2169 = vrsqrt.pop %v2153
          %v2170 = vrsqrt.pop %v2154
          %v2171 = vrsqrt.pop %v2155
          %v2172 = vrsqrt.pop %v2156
          %v2173 = vmul.f32 %v1917, %v2157
          %v2174 = vmul.f32 %v1918, %v2157
          %v2175 = vmul.f32 %v1919, %v2157
          %v2176 = vmul.f32 %v1920, %v2157
          %v2177 = vmul.f32 %v1921, %v2158
          %v2178 = vmul.f32 %v1922, %v2158
          %v2179 = vmul.f32 %v1923, %v2158
          %v2180 = vmul.f32 %v1924, %v2158
          %v2181 = vmul.f32 %v1925, %v2159
          %v2182 = vmul.f32 %v1926, %v2159
          %v2183 = vmul.f32 %v1927, %v2159
          %v2184 = vmul.f32 %v1928, %v2159
          %v2185 = vmul.f32 %v1929, %v2160
          %v2186 = vmul.f32 %v1930, %v2160
          %v2187 = vmul.f32 %v1931, %v2160
          %v2188 = vmul.f32 %v1932, %v2160
          %v2189 = vmul.f32 %v1933, %v2161
          %v2190 = vmul.f32 %v1934, %v2161
          %v2191 = vmul.f32 %v1935, %v2161
          %v2192 = vmul.f32 %v1936, %v2161
          %v2193 = vmul.f32 %v1937, %v2162
          %v2194 = vmul.f32 %v1938, %v2162
          %v2195 = vmul.f32 %v1939, %v2162
          %v2196 = vmul.f32 %v1940, %v2162
          %v2197 = vmul.f32 %v1941, %v2163
          %v2198 = vmul.f32 %v1942, %v2163
          %v2199 = vmul.f32 %v1943, %v2163
          %v2200 = vmul.f32 %v1944, %v2163
          %v2201 = vmul.f32 %v1945, %v2164
          %v2202 = vmul.f32 %v1946, %v2164
          %v2203 = vmul.f32 %v1947, %v2164
          %v2204 = vmul.f32 %v1948, %v2164
          %v2205 = vmul.f32 %v1949, %v2165
          %v2206 = vmul.f32 %v1950, %v2165
          %v2207 = vmul.f32 %v1951, %v2165
          %v2208 = vmul.f32 %v1952, %v2165
          %v2209 = vmul.f32 %v1953, %v2166
          %v2210 = vmul.f32 %v1954, %v2166
          %v2211 = vmul.f32 %v1955, %v2166
          %v2212 = vmul.f32 %v1956, %v2166
          %v2213 = vmul.f32 %v1957, %v2167
          %v2214 = vmul.f32 %v1958, %v2167
          %v2215 = vmul.f32 %v1959, %v2167
          %v2216 = vmul.f32 %v1960, %v2167
          %v2217 = vmul.f32 %v1961, %v2168
          %v2218 = vmul.f32 %v1962, %v2168
          %v2219 = vmul.f32 %v1963, %v2168
          %v2220 = vmul.f32 %v1964, %v2168
          %v2221 = vmul.f32 %v1965, %v2169
          %v2222 = vmul.f32 %v1966, %v2169
          %v2223 = vmul.f32 %v1967, %v2169
          %v2224 = vmul.f32 %v1968, %v2169
          %v2225 = vmul.f32 %v1969, %v2170
          %v2226 = vmul.f32 %v1970, %v2170
          %v2227 = vmul.f32 %v1971, %v2170
          %v2228 = vmul.f32 %v1972, %v2170
          %v2229 = vmul.f32 %v1973, %v2171
          %v2230 = vmul.f32 %v1974, %v2171
          %v2231 = vmul.f32 %v1975, %v2171
          %v2232 = vmul.f32 %v1976, %v2171
          %v2233 = vmul.f32 %v1977, %v2172
          %v2234 = vmul.f32 %v1978, %v2172
          %v2235 = vmul.f32 %v1979, %v2172
          %v2236 = vmul.f32 %v1980, %v2172
          %v2237 = vld [vmem:[%s5] sm:$0xf]
          %v2239 = vlaneseq
          %v2240 = vshrl.u32 %v2239, 7
          %v2241 = vsub.s32 0, %v2240
          %v2242 = vrot.slane %v2237, %v2241
          %v2243 = vlaneseq
          %v2244 = vshrl.u32 %v2243, 7
          %v2245 = vsub.s32 1, %v2244
          %v2246 = vrot.slane %v2237, %v2245
          %v2247 = vlaneseq
          %v2248 = vshrl.u32 %v2247, 7
          %v2249 = vsub.s32 2, %v2248
          %v2250 = vrot.slane %v2237, %v2249
          %v2251 = vlaneseq
          %v2252 = vshrl.u32 %v2251, 7
          %v2253 = vsub.s32 3, %v2252
          %v2254 = vrot.slane %v2237, %v2253
          %v2259 = vmul.f32 %v2173, %v2242
          %v2260 = vmul.f32 %v2174, %v2246
          %v2261 = vmul.f32 %v2175, %v2250
          %v2262 = vmul.f32 %v2176, %v2254
          %v2263 = vmul.f32 %v2177, %v2242
          %v2264 = vmul.f32 %v2178, %v2246
          %v2265 = vmul.f32 %v2179, %v2250
          %v2266 = vmul.f32 %v2180, %v2254
          %v2267 = vmul.f32 %v2181, %v2242
          %v2268 = vmul.f32 %v2182, %v2246
          %v2269 = vmul.f32 %v2183, %v2250
          %v2270 = vmul.f32 %v2184, %v2254
          %v2271 = vmul.f32 %v2185, %v2242
          %v2272 = vmul.f32 %v2186, %v2246
          %v2273 = vmul.f32 %v2187, %v2250
          %v2274 = vmul.f32 %v2188, %v2254
          %v2275 = vmul.f32 %v2189, %v2242
          %v2276 = vmul.f32 %v2190, %v2246
          %v2277 = vmul.f32 %v2191, %v2250
          %v2278 = vmul.f32 %v2192, %v2254
          %v2279 = vmul.f32 %v2193, %v2242
          %v2280 = vmul.f32 %v2194, %v2246
          %v2281 = vmul.f32 %v2195, %v2250
          %v2282 = vmul.f32 %v2196, %v2254
          %v2283 = vmul.f32 %v2197, %v2242
          %v2284 = vmul.f32 %v2198, %v2246
          %v2285 = vmul.f32 %v2199, %v2250
          %v2286 = vmul.f32 %v2200, %v2254
          %v2287 = vmul.f32 %v2201, %v2242
          %v2288 = vmul.f32 %v2202, %v2246
          %v2289 = vmul.f32 %v2203, %v2250
          %v2290 = vmul.f32 %v2204, %v2254
          %v2291 = vmul.f32 %v2205, %v2242
          %v2292 = vmul.f32 %v2206, %v2246
          %v2293 = vmul.f32 %v2207, %v2250
          %v2294 = vmul.f32 %v2208, %v2254
          %v2295 = vmul.f32 %v2209, %v2242
          %v2296 = vmul.f32 %v2210, %v2246
          %v2297 = vmul.f32 %v2211, %v2250
          %v2298 = vmul.f32 %v2212, %v2254
          %v2299 = vmul.f32 %v2213, %v2242
          %v2300 = vmul.f32 %v2214, %v2246
          %v2301 = vmul.f32 %v2215, %v2250
          %v2302 = vmul.f32 %v2216, %v2254
          %v2303 = vmul.f32 %v2217, %v2242
          %v2304 = vmul.f32 %v2218, %v2246
          %v2305 = vmul.f32 %v2219, %v2250
          %v2306 = vmul.f32 %v2220, %v2254
          %v2307 = vmul.f32 %v2221, %v2242
          %v2308 = vmul.f32 %v2222, %v2246
          %v2309 = vmul.f32 %v2223, %v2250
          %v2310 = vmul.f32 %v2224, %v2254
          %v2311 = vmul.f32 %v2225, %v2242
          %v2312 = vmul.f32 %v2226, %v2246
          %v2313 = vmul.f32 %v2227, %v2250
          %v2314 = vmul.f32 %v2228, %v2254
          %v2315 = vmul.f32 %v2229, %v2242
          %v2316 = vmul.f32 %v2230, %v2246
          %v2317 = vmul.f32 %v2231, %v2250
          %v2318 = vmul.f32 %v2232, %v2254
          %v2319 = vmul.f32 %v2233, %v2242
          %v2320 = vmul.f32 %v2234, %v2246
          %v2321 = vmul.f32 %v2235, %v2250
          %v2322 = vmul.f32 %v2236, %v2254
          %v2323 = vld [vmem:[%s6] sm:$0xf]
          %v2325 = vlaneseq
          %v2326 = vshrl.u32 %v2325, 7
          %v2327 = vsub.s32 0, %v2326
          %v2328 = vrot.slane %v2323, %v2327
          %v2329 = vlaneseq
          %v2330 = vshrl.u32 %v2329, 7
          %v2331 = vsub.s32 1, %v2330
          %v2332 = vrot.slane %v2323, %v2331
          %v2333 = vlaneseq
          %v2334 = vshrl.u32 %v2333, 7
          %v2335 = vsub.s32 2, %v2334
          %v2336 = vrot.slane %v2323, %v2335
          %v2337 = vlaneseq
          %v2338 = vshrl.u32 %v2337, 7
          %v2339 = vsub.s32 3, %v2338
          %v2340 = vrot.slane %v2323, %v2339
          %v2345 = vadd.f32 %v2259, %v2328
          %v2346 = vadd.f32 %v2260, %v2332
          %v2347 = vadd.f32 %v2261, %v2336
          %v2348 = vadd.f32 %v2262, %v2340
          %v2349 = vadd.f32 %v2263, %v2328
          %v2350 = vadd.f32 %v2264, %v2332
          %v2351 = vadd.f32 %v2265, %v2336
          %v2352 = vadd.f32 %v2266, %v2340
          %v2353 = vadd.f32 %v2267, %v2328
          %v2354 = vadd.f32 %v2268, %v2332
          %v2355 = vadd.f32 %v2269, %v2336
          %v2356 = vadd.f32 %v2270, %v2340
          %v2357 = vadd.f32 %v2271, %v2328
          %v2358 = vadd.f32 %v2272, %v2332
          %v2359 = vadd.f32 %v2273, %v2336
          %v2360 = vadd.f32 %v2274, %v2340
          %v2361 = vadd.f32 %v2275, %v2328
          %v2362 = vadd.f32 %v2276, %v2332
          %v2363 = vadd.f32 %v2277, %v2336
          %v2364 = vadd.f32 %v2278, %v2340
          %v2365 = vadd.f32 %v2279, %v2328
          %v2366 = vadd.f32 %v2280, %v2332
          %v2367 = vadd.f32 %v2281, %v2336
          %v2368 = vadd.f32 %v2282, %v2340
          %v2369 = vadd.f32 %v2283, %v2328
          %v2370 = vadd.f32 %v2284, %v2332
          %v2371 = vadd.f32 %v2285, %v2336
          %v2372 = vadd.f32 %v2286, %v2340
          %v2373 = vadd.f32 %v2287, %v2328
          %v2374 = vadd.f32 %v2288, %v2332
          %v2375 = vadd.f32 %v2289, %v2336
          %v2376 = vadd.f32 %v2290, %v2340
          %v2377 = vadd.f32 %v2291, %v2328
          %v2378 = vadd.f32 %v2292, %v2332
          %v2379 = vadd.f32 %v2293, %v2336
          %v2380 = vadd.f32 %v2294, %v2340
          %v2381 = vadd.f32 %v2295, %v2328
          %v2382 = vadd.f32 %v2296, %v2332
          %v2383 = vadd.f32 %v2297, %v2336
          %v2384 = vadd.f32 %v2298, %v2340
          %v2385 = vadd.f32 %v2299, %v2328
          %v2386 = vadd.f32 %v2300, %v2332
          %v2387 = vadd.f32 %v2301, %v2336
          %v2388 = vadd.f32 %v2302, %v2340
          %v2389 = vadd.f32 %v2303, %v2328
          %v2390 = vadd.f32 %v2304, %v2332
          %v2391 = vadd.f32 %v2305, %v2336
          %v2392 = vadd.f32 %v2306, %v2340
          %v2393 = vadd.f32 %v2307, %v2328
          %v2394 = vadd.f32 %v2308, %v2332
          %v2395 = vadd.f32 %v2309, %v2336
          %v2396 = vadd.f32 %v2310, %v2340
          %v2397 = vadd.f32 %v2311, %v2328
          %v2398 = vadd.f32 %v2312, %v2332
          %v2399 = vadd.f32 %v2313, %v2336
          %v2400 = vadd.f32 %v2314, %v2340
          %v2401 = vadd.f32 %v2315, %v2328
          %v2402 = vadd.f32 %v2316, %v2332
          %v2403 = vadd.f32 %v2317, %v2336
          %v2404 = vadd.f32 %v2318, %v2340
          %v2405 = vadd.f32 %v2319, %v2328
          %v2406 = vadd.f32 %v2320, %v2332
          %v2407 = vadd.f32 %v2321, %v2336
          %v2408 = vadd.f32 %v2322, %v2340
          %2409 = vst [vmem:[%s400] sm:$0xff] %v2345
          %2410 = vst [vmem:[%s400 + $0x8] sm:$0xff] %v2346
          %2411 = vst [vmem:[%s400 + $0x10] sm:$0xff] %v2347
          %2412 = vst [vmem:[%s400 + $0x18] sm:$0xff] %v2348
          %2413 = vst [vmem:[%s400 + $0x20] sm:$0xff] %v2349
          %2414 = vst [vmem:[%s400 + $0x28] sm:$0xff] %v2350
          %2415 = vst [vmem:[%s400 + $0x30] sm:$0xff] %v2351
          %2416 = vst [vmem:[%s400 + $0x38] sm:$0xff] %v2352
          %2417 = vst [vmem:[%s400 + $0x40] sm:$0xff] %v2353
          %2418 = vst [vmem:[%s400 + $0x48] sm:$0xff] %v2354
          %2419 = vst [vmem:[%s400 + $0x50] sm:$0xff] %v2355
          %2420 = vst [vmem:[%s400 + $0x58] sm:$0xff] %v2356
          %2421 = vst [vmem:[%s400 + $0x60] sm:$0xff] %v2357
          %2422 = vst [vmem:[%s400 + $0x68] sm:$0xff] %v2358
          %2423 = vst [vmem:[%s400 + $0x70] sm:$0xff] %v2359
          %2424 = vst [vmem:[%s400 + $0x78] sm:$0xff] %v2360
          %2425 = vst [vmem:[%s400 + $0x80] sm:$0xff] %v2361
          %2426 = vst [vmem:[%s400 + $0x88] sm:$0xff] %v2362
          %2427 = vst [vmem:[%s400 + $0x90] sm:$0xff] %v2363
          %2428 = vst [vmem:[%s400 + $0x98] sm:$0xff] %v2364
          %2429 = vst [vmem:[%s400 + $0xa0] sm:$0xff] %v2365
          %2430 = vst [vmem:[%s400 + $0xa8] sm:$0xff] %v2366
          %2431 = vst [vmem:[%s400 + $0xb0] sm:$0xff] %v2367
          %2432 = vst [vmem:[%s400 + $0xb8] sm:$0xff] %v2368
          %2433 = vst [vmem:[%s400 + $0xc0] sm:$0xff] %v2369
          %2434 = vst [vmem:[%s400 + $0xc8] sm:$0xff] %v2370
          %2435 = vst [vmem:[%s400 + $0xd0] sm:$0xff] %v2371
          %2436 = vst [vmem:[%s400 + $0xd8] sm:$0xff] %v2372
          %2437 = vst [vmem:[%s400 + $0xe0] sm:$0xff] %v2373
          %2438 = vst [vmem:[%s400 + $0xe8] sm:$0xff] %v2374
          %2439 = vst [vmem:[%s400 + $0xf0] sm:$0xff] %v2375
          %2440 = vst [vmem:[%s400 + $0xf8] sm:$0xff] %v2376
          %2441 = vst [vmem:[%s400 + $0x100] sm:$0xff] %v2377
          %2442 = vst [vmem:[%s400 + $0x108] sm:$0xff] %v2378
          %2443 = vst [vmem:[%s400 + $0x110] sm:$0xff] %v2379
          %2444 = vst [vmem:[%s400 + $0x118] sm:$0xff] %v2380
          %2445 = vst [vmem:[%s400 + $0x120] sm:$0xff] %v2381
          %2446 = vst [vmem:[%s400 + $0x128] sm:$0xff] %v2382
          %2447 = vst [vmem:[%s400 + $0x130] sm:$0xff] %v2383
          %2448 = vst [vmem:[%s400 + $0x138] sm:$0xff] %v2384
          %2449 = vst [vmem:[%s400 + $0x140] sm:$0xff] %v2385
          %2450 = vst [vmem:[%s400 + $0x148] sm:$0xff] %v2386
          %2451 = vst [vmem:[%s400 + $0x150] sm:$0xff] %v2387
          %2452 = vst [vmem:[%s400 + $0x158] sm:$0xff] %v2388
          %2453 = vst [vmem:[%s400 + $0x160] sm:$0xff] %v2389
          %2454 = vst [vmem:[%s400 + $0x168] sm:$0xff] %v2390
          %2455 = vst [vmem:[%s400 + $0x170] sm:$0xff] %v2391
          %2456 = vst [vmem:[%s400 + $0x178] sm:$0xff] %v2392
          %2457 = vst [vmem:[%s400 + $0x180] sm:$0xff] %v2393
          %2458 = vst [vmem:[%s400 + $0x188] sm:$0xff] %v2394
          %2459 = vst [vmem:[%s400 + $0x190] sm:$0xff] %v2395
          %2460 = vst [vmem:[%s400 + $0x198] sm:$0xff] %v2396
          %2461 = vst [vmem:[%s400 + $0x1a0] sm:$0xff] %v2397
          %2462 = vst [vmem:[%s400 + $0x1a8] sm:$0xff] %v2398
          %2463 = vst [vmem:[%s400 + $0x1b0] sm:$0xff] %v2399
          %2464 = vst [vmem:[%s400 + $0x1b8] sm:$0xff] %v2400
          %2465 = vst [vmem:[%s400 + $0x1c0] sm:$0xff] %v2401
          %2466 = vst [vmem:[%s400 + $0x1c8] sm:$0xff] %v2402
          %2467 = vst [vmem:[%s400 + $0x1d0] sm:$0xff] %v2403
          %2468 = vst [vmem:[%s400 + $0x1d8] sm:$0xff] %v2404
          %2469 = vst [vmem:[%s400 + $0x1e0] sm:$0xff] %v2405
          %2470 = vst [vmem:[%s400 + $0x1e8] sm:$0xff] %v2406
          %2471 = vst [vmem:[%s400 + $0x1f0] sm:$0xff] %v2407
          %2472 = vst [vmem:[%s400 + $0x1f8] sm:$0xff] %v2408
        $region68: #{tpu_custom_call.1} parent=47 // pred_fallthru
          _
        %s2473 = sand.u32 %s214, 1
        %s2474 = scalar_lea.sflag [#allocation6], %s2473
        %s2475 = sand.u32 %s214, 1
        %s2476 = smul.addr %s2475, 512
        %s2477 = scalar_lea.vmem [#allocation10], %s2476
        // Predicated region
        $region69: #{tpu_custom_call.1} parent=47 // pred_check
          %p2478 = pneg %p224
        $region70: #{tpu_custom_call.1} parent=47 // pred_check_branch
          %2480 = sbr.rel (%p2478) target = $region72
        $region71: #{tpu_custom_call.1} parent=47 // pred_region
          %s2481 = smul.u32 16, %s31
          %s2483 = ssub.s32 8192, 8192
          %2484 = vsyncadd %s2474, %s2483
          %s2485 = smul.addr %s2481, 4
          %s2486 = smul.addr %s2485, 128
          %s2487 = scalar_lea.hbm %s7, %s2486
          %s2488 = sshll.u32 %s2477, 4
          %s2489 = int_to_ptr.vmem [resolvable:$true] %s2488
          %2494 = dma.vmem_to_hbm [thread:$0]  %s2489, 8192, %s2487, %s2474, 512, 512, 32
        $region72: #{tpu_custom_call.1} parent=47 // pred_fallthru
          _
      $region48: #{tpu_custom_call.1} parent=5 // pred_fallthru
        _
      %p2495 = scmp.le.s32.totalorder 2, %s22
      // Predicated region
      $region73: #{tpu_custom_call.1} parent=5 // pred_check
        %p2496 = pneg %p2495
      $region74: #{tpu_custom_call.1} parent=5 // pred_check_branch
        %2498 = sbr.rel (%p2496) target = $region76
      $region75: #{tpu_custom_call.1} parent=5 // pred_region
        %s2499 = ssub.s32 %s22, 2
        // Predicated region
        $region77: #{tpu_custom_call.1} parent=75 // pred_check
          %p2500 = pneg %p230
        $region78: #{tpu_custom_call.1} parent=75 // pred_check_branch
          %2502 = sbr.rel (%p2500) target = $region80
        $region79: #{tpu_custom_call.1} parent=75 // pred_region
          %s2503 = sand.u32 %s215, 1
          %s2504 = scalar_lea.sflag [#allocation6], %s2503
          %s2505 = sand.u32 %s215, 1
          %s2506 = smul.addr %s2505, 512
          %s2507 = scalar_lea.vmem [#allocation10], %s2506
          %2508 = dma.done %s2504, 8192
        $region80: #{tpu_custom_call.1} parent=75 // pred_fallthru
          _
      $region76: #{tpu_custom_call.1} parent=5 // pred_fallthru
        _
    $region6: #{tpu_custom_call.1} parent=1 // loop_footer
      %s26 = sadd.s32 1, %s22
    $region7: #{tpu_custom_call.1} parent=1 // loop_footer_branch
      %21 = sbr.rel target = $region3
    $region8: #{tpu_custom_call.1} parent=1 // loop_exit
      _
    %2509 = vsyncpa [#allocation5], 1
    %s2510 = scalar_lea.sflag [#allocation5], 1
    %2511 = vsyncpa %s2510, 1
    %2512 = vsyncpa [#allocation8], 1
    %s2513 = scalar_lea.sflag [#allocation8], 1
    %2514 = vsyncpa %s2513, 1
    %2515 = vsyncpa [#allocation6], 1
    %s2516 = scalar_lea.sflag [#allocation6], 1
    %2517 = vsyncpa %s2516, 1

</llo_original>
